<compile_context>
chip_gen: v5e
topology: v5e:2x2
jax: 0.10.0
libtpu: 0.0.40
codegen_flags: <defaults>
</compile_context>

<pallas_src>
import functools

import jax
import jax.numpy as jnp
from jax.experimental import pallas as pl
from jax.experimental.pallas import tpu as pltpu

LANE = 128          # TPU lane width: feature dims padded to a multiple of this.
SUBLANE = 8
TARGET_TILE_B = 256  # >=256 rows per MXU call; amortizes per-step overhead.


def _round_up(n, m):
    return ((n + m - 1) // m) * m


def _pad2(a, rows, cols):
    return jnp.pad(a, ((0, rows - a.shape[0]), (0, cols - a.shape[1])))


# ---------------------------------------------------------------------------
# Pallas kernel: whole VAE forward for one batch tile, everything in VMEM.
# ---------------------------------------------------------------------------
def vae_forward_kernel(
    code_pad,
    x_ref, eps_ref,
    enc_w0_ref, enc_b0_ref, enc_w1_ref, enc_b1_ref,
    head_w_ref, head_b_ref,
    dec_w0_ref, dec_b0_ref, dec_w1_ref, dec_b1_ref,
    out_ref,
):
    bf16 = jnp.bfloat16
    x = x_ref[...]

    # ----- Encoder: (Linear -> Tanh) x 2 (bf16 MXU operands, f32 accumulation) ---
    h = jnp.tanh(
        jnp.dot(x.astype(bf16), enc_w0_ref[...],
                preferred_element_type=jnp.float32)
        + enc_b0_ref[...])
    h = jnp.tanh(
        jnp.dot(h.astype(bf16), enc_w1_ref[...],
                preferred_element_type=jnp.float32)
        + enc_b1_ref[...])

    # ----- Fused mu / log_var head: single matmul, lane-aligned split -----------
    head = (jnp.dot(h.astype(bf16), head_w_ref[...],
                    preferred_element_type=jnp.float32)
            + head_b_ref[...])
    mu = head[:, :code_pad]
    log_var = head[:, code_pad:]

    # ----- Reparameterize (f32): eps.mul(std).add_(mu) --------------------------
    std = jnp.exp(0.5 * log_var)
    code = eps_ref[...] * std + mu

    # ----- Decoder: Linear -> Tanh -> Linear -> Sigmoid -------------------------
    d = jnp.tanh(
        jnp.dot(code.astype(bf16), dec_w0_ref[...],
                preferred_element_type=jnp.float32)
        + dec_b0_ref[...])
    recon = jax.nn.sigmoid(
        jnp.dot(d.astype(bf16), dec_w1_ref[...],
                preferred_element_type=jnp.float32)
        + dec_b1_ref[...])

    # ----- One lane-dense store of all outputs: [code | recon | mu | log_var] ---
    out_ref[...] = jnp.concatenate([code, recon, mu, log_var], axis=-1)


# ---------------------------------------------------------------------------
# Wrapper: pad to lane-aligned tiles, batch-tiled grid, split packed output.
# ---------------------------------------------------------------------------
@jax.jit
def vae_forward(x, eps, params):
    batch, input_size = x.shape
    code_size = eps.shape[1]
    enc_hidden = params["enc_w0"].shape[1]
    split_size = params["enc_w1"].shape[1]
    dec_hidden = params["dec_w0"].shape[1]

    in_pad = _round_up(input_size, LANE)
    eh_pad = _round_up(enc_hidden, LANE)
    sp_pad = _round_up(split_size, LANE)
    cd_pad = _round_up(code_size, LANE)
    dh_pad = _round_up(dec_hidden, LANE)

    # Batch tiling: >=256 rows per grid step when the batch allows it.
    tile_b = TARGET_TILE_B if batch >= TARGET_TILE_B else _round_up(batch, SUBLANE)
    padded_batch = _round_up(batch, tile_b)
    grid = (padded_batch // tile_b,)

    # Zero-pad activations (padded rows/lanes are benign: zero-padded weight
    # rows/cols contribute exactly 0, and they are sliced away afterwards).
    x_p = jnp.pad(x, ((0, padded_batch - batch), (0, in_pad - input_size)))
    eps_p = jnp.pad(eps, ((0, padded_batch - batch), (0, cd_pad - code_size)))

    # Lane-aligned weights in bf16 (MXU-native, half the DMA); biases stay f32.
    bf16, f32 = jnp.bfloat16, jnp.float32
    enc_w0 = _pad2(params["enc_w0"], in_pad, eh_pad).astype(bf16)
    enc_b0 = _pad2(params["enc_b0"], 1, eh_pad).astype(f32)
    enc_w1 = _pad2(params["enc_w1"], eh_pad, sp_pad).astype(bf16)
    enc_b1 = _pad2(params["enc_b1"], 1, sp_pad).astype(f32)
    head_w = jnp.concatenate(
        [_pad2(params["mu_w"], sp_pad, cd_pad),
         _pad2(params["lv_w"], sp_pad, cd_pad)], axis=1).astype(bf16)
    head_b = jnp.concatenate(
        [_pad2(params["mu_b"], 1, cd_pad),
         _pad2(params["lv_b"], 1, cd_pad)], axis=1).astype(f32)
    dec_w0 = _pad2(params["dec_w0"], cd_pad, dh_pad).astype(bf16)
    dec_b0 = _pad2(params["dec_b0"], 1, dh_pad).astype(f32)
    dec_w1 = _pad2(params["dec_w1"], dh_pad, in_pad).astype(bf16)
    dec_b1 = _pad2(params["dec_b1"], 1, in_pad).astype(f32)

    weights = (enc_w0, enc_b0, enc_w1, enc_b1, head_w, head_b,
               dec_w0, dec_b0, dec_w1, dec_b1)

    out_width = 3 * cd_pad + in_pad  # [code | recon | mu | log_var], lane-aligned

    def tiled(width):
        return pl.BlockSpec((tile_b, width), lambda i: (i, 0))

    def resident(arr):  # whole array, same block every step -> stays in VMEM
        return pl.BlockSpec(arr.shape, lambda i: (0, 0))

    out_slab = pl.pallas_call(
        functools.partial(vae_forward_kernel, cd_pad),
        out_shape=jax.ShapeDtypeStruct((padded_batch, out_width), jnp.float32),
        grid=grid,
        in_specs=[tiled(in_pad), tiled(cd_pad)] + [resident(w) for w in weights],
        out_specs=pl.BlockSpec((tile_b, out_width), lambda i: (i, 0)),
        compiler_params=pltpu.CompilerParams(
            dimension_semantics=("parallel",)),  # batch axis -> v7x megacore
    )(x_p, eps_p, *weights)

    # Split / unpad the packed slab.
    code = out_slab[:batch, :code_size]
    recon = out_slab[:batch, cd_pad:cd_pad + input_size]
    mu = out_slab[:batch, cd_pad + in_pad:cd_pad + in_pad + code_size]
    log_var = out_slab[:batch,
                       2 * cd_pad + in_pad:2 * cd_pad + in_pad + code_size]
    return code, recon, mu, log_var


# ---------------------------------------------------------------------------
# Deterministic parameter init (PyTorch nn.Linear-style uniform(-k, k)).
# Weights stored transposed relative to PyTorch: [in_features, out_features].
# ---------------------------------------------------------------------------
def init_linear(key, fan_in, fan_out):
    k_w, k_b = jax.random.split(key)
    bound = 1.0 / jnp.sqrt(jnp.float32(fan_in))
    w = jax.random.uniform(k_w, (fan_in, fan_out), jnp.float32, -bound, bound)
    b = jax.random.uniform(k_b, (1, fan_out), jnp.float32, -bound, bound)
    return w, b


def init_vae_params(key, input_size, enc_hidden, split_size,
                    code_size, dec_hidden):
    keys = jax.random.split(key, 6)
    enc_w0, enc_b0 = init_linear(keys[0], input_size, enc_hidden)
    enc_w1, enc_b1 = init_linear(keys[1], enc_hidden, split_size)
    mu_w, mu_b = init_linear(keys[2], split_size, code_size)
    lv_w, lv_b = init_linear(keys[3], split_size, code_size)
    dec_w0, dec_b0 = init_linear(keys[4], code_size, dec_hidden)
    dec_w1, dec_b1 = init_linear(keys[5], dec_hidden, input_size)
    return dict(
        enc_w0=enc_w0, enc_b0=enc_b0, enc_w1=enc_w1, enc_b1=enc_b1,
        mu_w=mu_w, mu_b=mu_b, lv_w=lv_w, lv_b=lv_b,
        dec_w0=dec_w0, dec_b0=dec_b0, dec_w1=dec_w1, dec_b1=dec_b1,
    )


# ---------------------------------------------------------------------------
# Pure-JAX reference (matmul_dtype=bf16 matches the kernel's MXU precision).
# ---------------------------------------------------------------------------
def vae_forward_ref(x, eps, p, matmul_dtype=jnp.float32):
    def dot(a, w):
        return jnp.dot(a.astype(matmul_dtype), w.astype(matmul_dtype),
                       preferred_element_type=jnp.float32)
    h = jnp.tanh(dot(x, p["enc_w0"]) + p["enc_b0"])
    h = jnp.tanh(dot(h, p["enc_w1"]) + p["enc_b1"])
    mu = dot(h, p["mu_w"]) + p["mu_b"]
    log_var = dot(h, p["lv_w"]) + p["lv_b"]
    code = eps * jnp.exp(0.5 * log_var) + mu
    d = jnp.tanh(dot(code, p["dec_w0"]) + p["dec_b0"])
    recon = jax.nn.sigmoid(dot(d, p["dec_w1"]) + p["dec_b1"])
    return code, recon, mu, log_var


if __name__ == "__main__":
    # Module-consistent feature sizes; batch chosen to exercise a 2-step grid
    # (tile_b=256, padded batch=512) plus tail padding.
    batch = 300
    input_size = 32
    enc_hidden = 24
    split_size = 16
    code_size = 8
    dec_hidden = 24

    root = jax.random.PRNGKey(0)
    k_params, k_x, k_eps = jax.random.split(root, 3)

    params = init_vae_params(
        k_params, input_size, enc_hidden, split_size, code_size, dec_hidden
    )
    # Data-like input in [0, 1] (decoder output is a sigmoid reconstruction).
    x = jax.random.uniform(k_x, (batch, input_size), jnp.float32)
    # torch.randn_like(std) -> deterministic standard-normal noise passed in.
    eps = jax.random.normal(k_eps, (batch, code_size), jnp.float32)

    code, recon, mu, log_var = jax.block_until_ready(vae_forward(x, eps, params))

    assert code.shape == (batch, code_size)
    assert recon.shape == (batch, input_size)
    assert mu.shape == (batch, code_size)
    assert log_var.shape == (batch, code_size)

    # Tight check against a reference that uses the same bf16-matmul precision.
    refs_bf16 = vae_forward_ref(x, eps, params, matmul_dtype=jnp.bfloat16)
    for a, b in zip((code, recon, mu, log_var), refs_bf16):
        assert jnp.max(jnp.abs(a - b)) < 5e-3, float(jnp.max(jnp.abs(a - b)))

    # Loose sanity check against the full-f32 reference (bounds bf16 MXU rounding).
    refs_f32 = vae_forward_ref(x, eps, params, matmul_dtype=jnp.float32)
    for a, b in zip((code, recon, mu, log_var), refs_f32):
        assert jnp.max(jnp.abs(a - b)) < 2e-1, float(jnp.max(jnp.abs(a - b)))

    print("KERNEL_OK")
</pallas_src>

<mosaic_0001>
module attributes {stable_mosaic.version = 11 : i64} {
  func.func @vae_forward_kernel(%arg0: i32, %arg1: memref<256x128xf32, #tpu.memory_space<vmem>>, %arg2: memref<256x128xf32, #tpu.memory_space<vmem>>, %arg3: memref<128x128xbf16, #tpu.memory_space<vmem>>, %arg4: memref<1x128xf32, #tpu.memory_space<vmem>>, %arg5: memref<128x128xbf16, #tpu.memory_space<vmem>>, %arg6: memref<1x128xf32, #tpu.memory_space<vmem>>, %arg7: memref<128x256xbf16, #tpu.memory_space<vmem>>, %arg8: memref<1x256xf32, #tpu.memory_space<vmem>>, %arg9: memref<128x128xbf16, #tpu.memory_space<vmem>>, %arg10: memref<1x128xf32, #tpu.memory_space<vmem>>, %arg11: memref<128x128xbf16, #tpu.memory_space<vmem>>, %arg12: memref<1x128xf32, #tpu.memory_space<vmem>>, %arg13: memref<256x512xf32, #tpu.memory_space<vmem>>) attributes {dimension_semantics = [#tpu.dimension_semantics<parallel>], iteration_bounds = array<i64: 2>, scalar_prefetch = 0 : i64, scratch_operands = 0 : i64, tpu.core_type = #tpu.core_type<tc>, window_params = [{transform_indices = @transform_0, window_bounds = array<i64: 256, 128>}, {transform_indices = @transform_1, window_bounds = array<i64: 256, 128>}, {pipeline_mode = #tpu.pipeline_mode<synchronous>, transform_indices = @transform_2, window_bounds = array<i64: 128, 128>}, {pipeline_mode = #tpu.pipeline_mode<synchronous>, transform_indices = @transform_3, window_bounds = array<i64: 1, 128>}, {pipeline_mode = #tpu.pipeline_mode<synchronous>, transform_indices = @transform_4, window_bounds = array<i64: 128, 128>}, {pipeline_mode = #tpu.pipeline_mode<synchronous>, transform_indices = @transform_5, window_bounds = array<i64: 1, 128>}, {pipeline_mode = #tpu.pipeline_mode<synchronous>, transform_indices = @transform_6, window_bounds = array<i64: 128, 256>}, {pipeline_mode = #tpu.pipeline_mode<synchronous>, transform_indices = @transform_7, window_bounds = array<i64: 1, 256>}, {pipeline_mode = #tpu.pipeline_mode<synchronous>, transform_indices = @transform_8, window_bounds = array<i64: 128, 128>}, {pipeline_mode = #tpu.pipeline_mode<synchronous>, transform_indices = @transform_9, window_bounds = array<i64: 1, 128>}, {pipeline_mode = #tpu.pipeline_mode<synchronous>, transform_indices = @transform_10, window_bounds = array<i64: 128, 128>}, {pipeline_mode = #tpu.pipeline_mode<synchronous>, transform_indices = @transform_11, window_bounds = array<i64: 1, 128>}, {transform_indices = @transform_12, window_bounds = array<i64: 256, 512>}]} {
    %c0 = arith.constant 0 : index
    %c0_0 = arith.constant 0 : index
    %0 = vector.load %arg1[%c0, %c0_0] : memref<256x128xf32, #tpu.memory_space<vmem>>, vector<256x128xf32>
    %1 = arith.truncf %0 : vector<256x128xf32> to vector<256x128xbf16>
    %c0_1 = arith.constant 0 : index
    %c0_2 = arith.constant 0 : index
    %2 = vector.load %arg3[%c0_1, %c0_2] : memref<128x128xbf16, #tpu.memory_space<vmem>>, vector<128x128xbf16>
    %cst = arith.constant dense<0.000000e+00> : vector<256x128xf32>
    %3 = tpu.matmul %1, %2, %cst {dimension_numbers = #tpu.dot_dimension_numbers<[1], [0], [0], [1], [0, 0, 1, 1], [], []>} : vector<256x128xbf16>, vector<128x128xbf16>, vector<256x128xf32> -> vector<256x128xf32>
    %c0_3 = arith.constant 0 : index
    %c0_4 = arith.constant 0 : index
    %4 = vector.load %arg4[%c0_3, %c0_4] : memref<1x128xf32, #tpu.memory_space<vmem>>, vector<1x128xf32>
    %5 = vector.broadcast %4 : vector<1x128xf32> to vector<256x128xf32>
    %6 = arith.addf %3, %5 : vector<256x128xf32>
    %7 = math.tanh %6 : vector<256x128xf32>
    %8 = arith.truncf %7 : vector<256x128xf32> to vector<256x128xbf16>
    %c0_5 = arith.constant 0 : index
    %c0_6 = arith.constant 0 : index
    %9 = vector.load %arg5[%c0_5, %c0_6] : memref<128x128xbf16, #tpu.memory_space<vmem>>, vector<128x128xbf16>
    %cst_7 = arith.constant dense<0.000000e+00> : vector<256x128xf32>
    %10 = tpu.matmul %8, %9, %cst_7 {dimension_numbers = #tpu.dot_dimension_numbers<[1], [0], [0], [1], [0, 0, 1, 1], [], []>} : vector<256x128xbf16>, vector<128x128xbf16>, vector<256x128xf32> -> vector<256x128xf32>
    %c0_8 = arith.constant 0 : index
    %c0_9 = arith.constant 0 : index
    %11 = vector.load %arg6[%c0_8, %c0_9] : memref<1x128xf32, #tpu.memory_space<vmem>>, vector<1x128xf32>
    %12 = vector.broadcast %11 : vector<1x128xf32> to vector<256x128xf32>
    %13 = arith.addf %10, %12 : vector<256x128xf32>
    %14 = math.tanh %13 : vector<256x128xf32>
    %15 = arith.truncf %14 : vector<256x128xf32> to vector<256x128xbf16>
    %c0_10 = arith.constant 0 : index
    %c0_11 = arith.constant 0 : index
    %16 = vector.load %arg7[%c0_10, %c0_11] : memref<128x256xbf16, #tpu.memory_space<vmem>>, vector<128x256xbf16>
    %cst_12 = arith.constant dense<0.000000e+00> : vector<256x256xf32>
    %17 = tpu.matmul %15, %16, %cst_12 {dimension_numbers = #tpu.dot_dimension_numbers<[1], [0], [0], [1], [0, 0, 1, 1], [], []>} : vector<256x128xbf16>, vector<128x256xbf16>, vector<256x256xf32> -> vector<256x256xf32>
    %c0_13 = arith.constant 0 : index
    %c0_14 = arith.constant 0 : index
    %18 = vector.load %arg8[%c0_13, %c0_14] : memref<1x256xf32, #tpu.memory_space<vmem>>, vector<1x256xf32>
    %19 = vector.broadcast %18 : vector<1x256xf32> to vector<256x256xf32>
    %20 = arith.addf %17, %19 : vector<256x256xf32>
    %21 = vector.extract_strided_slice %20 {offsets = [0, 0], sizes = [256, 128], strides = [1, 1]} : vector<256x256xf32> to vector<256x128xf32>
    %22 = vector.extract_strided_slice %20 {offsets = [0, 128], sizes = [256, 128], strides = [1, 1]} : vector<256x256xf32> to vector<256x128xf32>
    %cst_15 = arith.constant 5.000000e-01 : f32
    %23 = vector.broadcast %cst_15 : f32 to vector<256x128xf32>
    %24 = arith.mulf %23, %22 : vector<256x128xf32>
    %25 = math.exp %24 : vector<256x128xf32>
    %c0_16 = arith.constant 0 : index
    %c0_17 = arith.constant 0 : index
    %26 = vector.load %arg2[%c0_16, %c0_17] : memref<256x128xf32, #tpu.memory_space<vmem>>, vector<256x128xf32>
    %27 = arith.mulf %26, %25 : vector<256x128xf32>
    %28 = arith.addf %27, %21 : vector<256x128xf32>
    %29 = arith.truncf %28 : vector<256x128xf32> to vector<256x128xbf16>
    %c0_18 = arith.constant 0 : index
    %c0_19 = arith.constant 0 : index
    %30 = vector.load %arg9[%c0_18, %c0_19] : memref<128x128xbf16, #tpu.memory_space<vmem>>, vector<128x128xbf16>
    %cst_20 = arith.constant dense<0.000000e+00> : vector<256x128xf32>
    %31 = tpu.matmul %29, %30, %cst_20 {dimension_numbers = #tpu.dot_dimension_numbers<[1], [0], [0], [1], [0, 0, 1, 1], [], []>} : vector<256x128xbf16>, vector<128x128xbf16>, vector<256x128xf32> -> vector<256x128xf32>
    %c0_21 = arith.constant 0 : index
    %c0_22 = arith.constant 0 : index
    %32 = vector.load %arg10[%c0_21, %c0_22] : memref<1x128xf32, #tpu.memory_space<vmem>>, vector<1x128xf32>
    %33 = vector.broadcast %32 : vector<1x128xf32> to vector<256x128xf32>
    %34 = arith.addf %31, %33 : vector<256x128xf32>
    %35 = math.tanh %34 : vector<256x128xf32>
    %36 = arith.truncf %35 : vector<256x128xf32> to vector<256x128xbf16>
    %c0_23 = arith.constant 0 : index
    %c0_24 = arith.constant 0 : index
    %37 = vector.load %arg11[%c0_23, %c0_24] : memref<128x128xbf16, #tpu.memory_space<vmem>>, vector<128x128xbf16>
    %cst_25 = arith.constant dense<0.000000e+00> : vector<256x128xf32>
    %38 = tpu.matmul %36, %37, %cst_25 {dimension_numbers = #tpu.dot_dimension_numbers<[1], [0], [0], [1], [0, 0, 1, 1], [], []>} : vector<256x128xbf16>, vector<128x128xbf16>, vector<256x128xf32> -> vector<256x128xf32>
    %c0_26 = arith.constant 0 : index
    %c0_27 = arith.constant 0 : index
    %39 = vector.load %arg12[%c0_26, %c0_27] : memref<1x128xf32, #tpu.memory_space<vmem>>, vector<1x128xf32>
    %40 = vector.broadcast %39 : vector<1x128xf32> to vector<256x128xf32>
    %41 = arith.addf %38, %40 : vector<256x128xf32>
    %42 = arith.negf %41 : vector<256x128xf32>
    %43 = math.exp %42 : vector<256x128xf32>
    %cst_28 = arith.constant 1.000000e+00 : f32
    %44 = vector.broadcast %cst_28 : f32 to vector<256x128xf32>
    %45 = arith.addf %44, %43 : vector<256x128xf32>
    %46 = arith.divf %44, %45 : vector<256x128xf32>
    %47 = tpu.concatenate %28, %46, %21, %22 in 1 : vector<256x128xf32>, vector<256x128xf32>, vector<256x128xf32>, vector<256x128xf32> -> vector<256x512xf32>
    %c0_29 = arith.constant 0 : index
    %c0_30 = arith.constant 0 : index
    %48 = vector.load %arg13[%c0_29, %c0_30] : memref<256x512xf32, #tpu.memory_space<vmem>>, vector<256x512xf32>
    tpu.vector_store %arg13[%c0_29, %c0_30], %47 {strides = array<i32>} : memref<256x512xf32, #tpu.memory_space<vmem>>, vector<256x512xf32>,
    return
  }
  func.func @transform_0(%arg0: i32) -> (i32, i32) {
    %c0_i32 = arith.constant 0 : i32
    %c0_i32_0 = arith.constant 0 : i32
    return %arg0, %c0_i32 : i32, i32
  }
  func.func @transform_1(%arg0: i32) -> (i32, i32) {
    %c0_i32 = arith.constant 0 : i32
    %c0_i32_0 = arith.constant 0 : i32
    return %arg0, %c0_i32 : i32, i32
  }
  func.func @transform_2(%arg0: i32) -> (i32, i32) {
    %c0_i32 = arith.constant 0 : i32
    %c0_i32_0 = arith.constant 0 : i32
    %c0_i32_1 = arith.constant 0 : i32
    return %c0_i32, %c0_i32_0 : i32, i32
  }
  func.func @transform_3(%arg0: i32) -> (i32, i32) {
    %c0_i32 = arith.constant 0 : i32
    %c0_i32_0 = arith.constant 0 : i32
    %c0_i32_1 = arith.constant 0 : i32
    return %c0_i32, %c0_i32_0 : i32, i32
  }
  func.func @transform_4(%arg0: i32) -> (i32, i32) {
    %c0_i32 = arith.constant 0 : i32
    %c0_i32_0 = arith.constant 0 : i32
    %c0_i32_1 = arith.constant 0 : i32
    return %c0_i32, %c0_i32_0 : i32, i32
  }
  func.func @transform_5(%arg0: i32) -> (i32, i32) {
    %c0_i32 = arith.constant 0 : i32
    %c0_i32_0 = arith.constant 0 : i32
    %c0_i32_1 = arith.constant 0 : i32
    return %c0_i32, %c0_i32_0 : i32, i32
  }
  func.func @transform_6(%arg0: i32) -> (i32, i32) {
    %c0_i32 = arith.constant 0 : i32
    %c0_i32_0 = arith.constant 0 : i32
    %c0_i32_1 = arith.constant 0 : i32
    return %c0_i32, %c0_i32_0 : i32, i32
  }
  func.func @transform_7(%arg0: i32) -> (i32, i32) {
    %c0_i32 = arith.constant 0 : i32
    %c0_i32_0 = arith.constant 0 : i32
    %c0_i32_1 = arith.constant 0 : i32
    return %c0_i32, %c0_i32_0 : i32, i32
  }
  func.func @transform_8(%arg0: i32) -> (i32, i32) {
    %c0_i32 = arith.constant 0 : i32
    %c0_i32_0 = arith.constant 0 : i32
    %c0_i32_1 = arith.constant 0 : i32
    return %c0_i32, %c0_i32_0 : i32, i32
  }
  func.func @transform_9(%arg0: i32) -> (i32, i32) {
    %c0_i32 = arith.constant 0 : i32
    %c0_i32_0 = arith.constant 0 : i32
    %c0_i32_1 = arith.constant 0 : i32
    return %c0_i32, %c0_i32_0 : i32, i32
  }
  func.func @transform_10(%arg0: i32) -> (i32, i32) {
    %c0_i32 = arith.constant 0 : i32
    %c0_i32_0 = arith.constant 0 : i32
    %c0_i32_1 = arith.constant 0 : i32
    return %c0_i32, %c0_i32_0 : i32, i32
  }
  func.func @transform_11(%arg0: i32) -> (i32, i32) {
    %c0_i32 = arith.constant 0 : i32
    %c0_i32_0 = arith.constant 0 : i32
    %c0_i32_1 = arith.constant 0 : i32
    return %c0_i32, %c0_i32_0 : i32, i32
  }
  func.func @transform_12(%arg0: i32) -> (i32, i32) {
    %c0_i32 = arith.constant 0 : i32
    %c0_i32_0 = arith.constant 0 : i32
    return %arg0, %c0_i32 : i32, i32
  }
}

</mosaic_0001>

<llo_original>
// kernel: vae_forward.1
$region0: #{vae_forward.1}
  #allocation0 [shape = 'u32[]', space=smem, size = 0x4, offset = 0x4, fixed_abs, tag = 'smem constant byte address 0x4 - core index']
  #allocation1 [shape = 'u32[72,128]{1,0:T(1,128)}', space=vmem, size = 0x9000, scoped, tag = 'internal scratch']
  %s0 = inlined_call_operand.vmem [shape: f32[512,128], index: 0, kind: input, shape index: {}]
  %s1 = inlined_call_operand.vmem [shape: f32[512,128], index: 1, kind: input, shape index: {}]
  %s2 = inlined_call_operand.vmem [shape: bf16[128,128], index: 2, kind: input, shape index: {}]
  %s3 = inlined_call_operand.vmem [shape: f32[1,128], index: 3, kind: input, shape index: {}]
  %s4 = inlined_call_operand.vmem [shape: bf16[128,128], index: 4, kind: input, shape index: {}]
  %s5 = inlined_call_operand.vmem [shape: f32[1,128], index: 5, kind: input, shape index: {}]
  %s6 = inlined_call_operand.vmem [shape: bf16[128,256], index: 6, kind: input, shape index: {}]
  %s7 = inlined_call_operand.vmem [shape: f32[1,256], index: 7, kind: input, shape index: {}]
  %s8 = inlined_call_operand.vmem [shape: bf16[128,128], index: 8, kind: input, shape index: {}]
  %s9 = inlined_call_operand.vmem [shape: f32[1,128], index: 9, kind: input, shape index: {}]
  %s10 = inlined_call_operand.vmem [shape: bf16[128,128], index: 10, kind: input, shape index: {}]
  %s11 = inlined_call_operand.vmem [shape: f32[1,128], index: 11, kind: input, shape index: {}]
  %s12 = inlined_call_operand.vmem [shape: f32[512,512], index: 12, kind: output, shape index: {}]
  %s13 = sld [smem:[#allocation0]]
  $region81: #{vae_forward.1} parent=0
    _
  %s15 = ssub.s32 1, %s13
  %s16 = scalar_select 0, %s15, %s13
  loop: start=0, step=1, limit=4
  $region2: #{vae_forward.1} parent=0 // loop_pre_header
    _
  $region3: #{vae_forward.1} parent=0 // loop_header
    %s18 = sphi 0, %s22
    %p19 = scmp.ge.s32.totalorder %s18, 4
    %s28 = sphi 0, %s30
    %s31 = sphi 0, %s28
    %s32 = sphi 0, %s31
    %s48 = sphi 0, %s32
    %s54 = sphi 0, %s56
    %s57 = sphi 0, %s54
    %s58 = sphi 0, %s57
    %s74 = sphi 0, %s58
    %s78 = sphi 0, %s78
    %s80 = sphi 0, %s78
    %s81 = sphi 0, %s80
    %s95 = sphi 0, %s81
    %s99 = sphi 0, %s99
    %s101 = sphi 0, %s99
    %s102 = sphi 0, %s101
    %s116 = sphi 0, %s102
    %s120 = sphi 0, %s120
    %s122 = sphi 0, %s120
    %s123 = sphi 0, %s122
    %s137 = sphi 0, %s123
    %s141 = sphi 0, %s141
    %s143 = sphi 0, %s141
    %s144 = sphi 0, %s143
    %s158 = sphi 0, %s144
    %s162 = sphi 0, %s162
    %s164 = sphi 0, %s162
    %s165 = sphi 0, %s164
    %s179 = sphi 0, %s165
    %s183 = sphi 0, %s183
    %s185 = sphi 0, %s183
    %s186 = sphi 0, %s185
    %s200 = sphi 0, %s186
    %s204 = sphi 0, %s204
    %s206 = sphi 0, %s204
    %s207 = sphi 0, %s206
    %s221 = sphi 0, %s207
    %s225 = sphi 0, %s225
    %s227 = sphi 0, %s225
    %s228 = sphi 0, %s227
    %s242 = sphi 0, %s228
    %s246 = sphi 0, %s246
    %s248 = sphi 0, %s246
    %s249 = sphi 0, %s248
    %s263 = sphi 0, %s249
    %s267 = sphi 0, %s267
    %s269 = sphi 0, %s267
    %s270 = sphi 0, %s269
    %s284 = sphi 0, %s270
    %s290 = sphi 0, %s292
    %s293 = sphi 0, %s290
    %s294 = sphi 0, %s293
    %s310 = sphi 0, %s294
  $region4: #{vae_forward.1} parent=0 // loop_header_branch
    %21 = sbr.rel (%p19) target = $region8
  $region5: #{vae_forward.1} parent=0 // loop_body
    %s23 = ssub.s32 %s18, 1
    %s24 = ssub.s32 %s18, 2
    %s25 = sadd.s32 %s18, 1
    %s26 = ssub.s32 %s18, %s25
    %p27 = scmp.eq.s32.totalorder %s26, 0
    %s29 = sadd.s32 %s28, 1
    %s30 = scalar_select %p27, %s28, %s29
    %p33 = pneg %p27
    %p34 = scmp.eq.s32.totalorder %s18, 1
    %p35 = por %p33, %p34
    %p36 = scmp.ne.s32.totalorder %s28, %s31
    %p37 = scmp.eq.s32.totalorder %s18, 0
    %p38 = por %p36, %p37
    %p39 = scmp.ne.s32.totalorder %s28, %s31
    %p40 = scmp.eq.s32.totalorder %s23, 1
    %p41 = por %p39, %p40
    %p42 = scmp.ne.s32.totalorder %s31, %s32
    %p43 = scmp.eq.s32.totalorder %s23, 0
    %p44 = por %p42, %p43
    %p45 = scmp.ne.s32.totalorder %s31, %s32
    %p46 = scmp.eq.s32.totalorder %s24, 1
    %p47 = por %p45, %p46
    %p49 = scmp.ne.s32.totalorder %s32, %s48
    %p50 = scmp.eq.s32.totalorder %s24, 0
    %p51 = por %p49, %p50
    %s52 = ssub.s32 %s18, %s25
    %p53 = scmp.eq.s32.totalorder %s52, 0
    %s55 = sadd.s32 %s54, 1
    %s56 = scalar_select %p53, %s54, %s55
    %p59 = pneg %p53
    %p60 = scmp.eq.s32.totalorder %s18, 1
    %p61 = por %p59, %p60
    %p62 = scmp.ne.s32.totalorder %s54, %s57
    %p63 = scmp.eq.s32.totalorder %s18, 0
    %p64 = por %p62, %p63
    %p65 = scmp.ne.s32.totalorder %s54, %s57
    %p66 = scmp.eq.s32.totalorder %s23, 1
    %p67 = por %p65, %p66
    %p68 = scmp.ne.s32.totalorder %s57, %s58
    %p69 = scmp.eq.s32.totalorder %s23, 0
    %p70 = por %p68, %p69
    %p71 = scmp.ne.s32.totalorder %s57, %s58
    %p72 = scmp.eq.s32.totalorder %s24, 1
    %p73 = por %p71, %p72
    %p75 = scmp.ne.s32.totalorder %s58, %s74
    %p76 = scmp.eq.s32.totalorder %s24, 0
    %p77 = por %p75, %p76
    %s79 = sadd.s32 %s78, 1
    %p82 = scmp.eq.s32.totalorder %s18, 1
    %p83 = scmp.ne.s32.totalorder %s78, %s80
    %p84 = scmp.eq.s32.totalorder %s18, 0
    %p85 = por %p83, %p84
    %p86 = scmp.ne.s32.totalorder %s78, %s80
    %p87 = scmp.eq.s32.totalorder %s23, 1
    %p88 = por %p86, %p87
    %p89 = scmp.ne.s32.totalorder %s80, %s81
    %p90 = scmp.eq.s32.totalorder %s23, 0
    %p91 = por %p89, %p90
    %p92 = scmp.ne.s32.totalorder %s80, %s81
    %p93 = scmp.eq.s32.totalorder %s24, 1
    %p94 = por %p92, %p93
    %p96 = scmp.ne.s32.totalorder %s81, %s95
    %p97 = scmp.eq.s32.totalorder %s24, 0
    %p98 = por %p96, %p97
    %s100 = sadd.s32 %s99, 1
    %p103 = scmp.eq.s32.totalorder %s18, 1
    %p104 = scmp.ne.s32.totalorder %s99, %s101
    %p105 = scmp.eq.s32.totalorder %s18, 0
    %p106 = por %p104, %p105
    %p107 = scmp.ne.s32.totalorder %s99, %s101
    %p108 = scmp.eq.s32.totalorder %s23, 1
    %p109 = por %p107, %p108
    %p110 = scmp.ne.s32.totalorder %s101, %s102
    %p111 = scmp.eq.s32.totalorder %s23, 0
    %p112 = por %p110, %p111
    %p113 = scmp.ne.s32.totalorder %s101, %s102
    %p114 = scmp.eq.s32.totalorder %s24, 1
    %p115 = por %p113, %p114
    %p117 = scmp.ne.s32.totalorder %s102, %s116
    %p118 = scmp.eq.s32.totalorder %s24, 0
    %p119 = por %p117, %p118
    %s121 = sadd.s32 %s120, 1
    %p124 = scmp.eq.s32.totalorder %s18, 1
    %p125 = scmp.ne.s32.totalorder %s120, %s122
    %p126 = scmp.eq.s32.totalorder %s18, 0
    %p127 = por %p125, %p126
    %p128 = scmp.ne.s32.totalorder %s120, %s122
    %p129 = scmp.eq.s32.totalorder %s23, 1
    %p130 = por %p128, %p129
    %p131 = scmp.ne.s32.totalorder %s122, %s123
    %p132 = scmp.eq.s32.totalorder %s23, 0
    %p133 = por %p131, %p132
    %p134 = scmp.ne.s32.totalorder %s122, %s123
    %p135 = scmp.eq.s32.totalorder %s24, 1
    %p136 = por %p134, %p135
    %p138 = scmp.ne.s32.totalorder %s123, %s137
    %p139 = scmp.eq.s32.totalorder %s24, 0
    %p140 = por %p138, %p139
    %s142 = sadd.s32 %s141, 1
    %p145 = scmp.eq.s32.totalorder %s18, 1
    %p146 = scmp.ne.s32.totalorder %s141, %s143
    %p147 = scmp.eq.s32.totalorder %s18, 0
    %p148 = por %p146, %p147
    %p149 = scmp.ne.s32.totalorder %s141, %s143
    %p150 = scmp.eq.s32.totalorder %s23, 1
    %p151 = por %p149, %p150
    %p152 = scmp.ne.s32.totalorder %s143, %s144
    %p153 = scmp.eq.s32.totalorder %s23, 0
    %p154 = por %p152, %p153
    %p155 = scmp.ne.s32.totalorder %s143, %s144
    %p156 = scmp.eq.s32.totalorder %s24, 1
    %p157 = por %p155, %p156
    %p159 = scmp.ne.s32.totalorder %s144, %s158
    %p160 = scmp.eq.s32.totalorder %s24, 0
    %p161 = por %p159, %p160
    %s163 = sadd.s32 %s162, 1
    %p166 = scmp.eq.s32.totalorder %s18, 1
    %p167 = scmp.ne.s32.totalorder %s162, %s164
    %p168 = scmp.eq.s32.totalorder %s18, 0
    %p169 = por %p167, %p168
    %p170 = scmp.ne.s32.totalorder %s162, %s164
    %p171 = scmp.eq.s32.totalorder %s23, 1
    %p172 = por %p170, %p171
    %p173 = scmp.ne.s32.totalorder %s164, %s165
    %p174 = scmp.eq.s32.totalorder %s23, 0
    %p175 = por %p173, %p174
    %p176 = scmp.ne.s32.totalorder %s164, %s165
    %p177 = scmp.eq.s32.totalorder %s24, 1
    %p178 = por %p176, %p177
    %p180 = scmp.ne.s32.totalorder %s165, %s179
    %p181 = scmp.eq.s32.totalorder %s24, 0
    %p182 = por %p180, %p181
    %s184 = sadd.s32 %s183, 1
    %p187 = scmp.eq.s32.totalorder %s18, 1
    %p188 = scmp.ne.s32.totalorder %s183, %s185
    %p189 = scmp.eq.s32.totalorder %s18, 0
    %p190 = por %p188, %p189
    %p191 = scmp.ne.s32.totalorder %s183, %s185
    %p192 = scmp.eq.s32.totalorder %s23, 1
    %p193 = por %p191, %p192
    %p194 = scmp.ne.s32.totalorder %s185, %s186
    %p195 = scmp.eq.s32.totalorder %s23, 0
    %p196 = por %p194, %p195
    %p197 = scmp.ne.s32.totalorder %s185, %s186
    %p198 = scmp.eq.s32.totalorder %s24, 1
    %p199 = por %p197, %p198
    %p201 = scmp.ne.s32.totalorder %s186, %s200
    %p202 = scmp.eq.s32.totalorder %s24, 0
    %p203 = por %p201, %p202
    %s205 = sadd.s32 %s204, 1
    %p208 = scmp.eq.s32.totalorder %s18, 1
    %p209 = scmp.ne.s32.totalorder %s204, %s206
    %p210 = scmp.eq.s32.totalorder %s18, 0
    %p211 = por %p209, %p210
    %p212 = scmp.ne.s32.totalorder %s204, %s206
    %p213 = scmp.eq.s32.totalorder %s23, 1
    %p214 = por %p212, %p213
    %p215 = scmp.ne.s32.totalorder %s206, %s207
    %p216 = scmp.eq.s32.totalorder %s23, 0
    %p217 = por %p215, %p216
    %p218 = scmp.ne.s32.totalorder %s206, %s207
    %p219 = scmp.eq.s32.totalorder %s24, 1
    %p220 = por %p218, %p219
    %p222 = scmp.ne.s32.totalorder %s207, %s221
    %p223 = scmp.eq.s32.totalorder %s24, 0
    %p224 = por %p222, %p223
    %s226 = sadd.s32 %s225, 1
    %p229 = scmp.eq.s32.totalorder %s18, 1
    %p230 = scmp.ne.s32.totalorder %s225, %s227
    %p231 = scmp.eq.s32.totalorder %s18, 0
    %p232 = por %p230, %p231
    %p233 = scmp.ne.s32.totalorder %s225, %s227
    %p234 = scmp.eq.s32.totalorder %s23, 1
    %p235 = por %p233, %p234
    %p236 = scmp.ne.s32.totalorder %s227, %s228
    %p237 = scmp.eq.s32.totalorder %s23, 0
    %p238 = por %p236, %p237
    %p239 = scmp.ne.s32.totalorder %s227, %s228
    %p240 = scmp.eq.s32.totalorder %s24, 1
    %p241 = por %p239, %p240
    %p243 = scmp.ne.s32.totalorder %s228, %s242
    %p244 = scmp.eq.s32.totalorder %s24, 0
    %p245 = por %p243, %p244
    %s247 = sadd.s32 %s246, 1
    %p250 = scmp.eq.s32.totalorder %s18, 1
    %p251 = scmp.ne.s32.totalorder %s246, %s248
    %p252 = scmp.eq.s32.totalorder %s18, 0
    %p253 = por %p251, %p252
    %p254 = scmp.ne.s32.totalorder %s246, %s248
    %p255 = scmp.eq.s32.totalorder %s23, 1
    %p256 = por %p254, %p255
    %p257 = scmp.ne.s32.totalorder %s248, %s249
    %p258 = scmp.eq.s32.totalorder %s23, 0
    %p259 = por %p257, %p258
    %p260 = scmp.ne.s32.totalorder %s248, %s249
    %p261 = scmp.eq.s32.totalorder %s24, 1
    %p262 = por %p260, %p261
    %p264 = scmp.ne.s32.totalorder %s249, %s263
    %p265 = scmp.eq.s32.totalorder %s24, 0
    %p266 = por %p264, %p265
    %s268 = sadd.s32 %s267, 1
    %p271 = scmp.eq.s32.totalorder %s18, 1
    %p272 = scmp.ne.s32.totalorder %s267, %s269
    %p273 = scmp.eq.s32.totalorder %s18, 0
    %p274 = por %p272, %p273
    %p275 = scmp.ne.s32.totalorder %s267, %s269
    %p276 = scmp.eq.s32.totalorder %s23, 1
    %p277 = por %p275, %p276
    %p278 = scmp.ne.s32.totalorder %s269, %s270
    %p279 = scmp.eq.s32.totalorder %s23, 0
    %p280 = por %p278, %p279
    %p281 = scmp.ne.s32.totalorder %s269, %s270
    %p282 = scmp.eq.s32.totalorder %s24, 1
    %p283 = por %p281, %p282
    %p285 = scmp.ne.s32.totalorder %s270, %s284
    %p286 = scmp.eq.s32.totalorder %s24, 0
    %p287 = por %p285, %p286
    %s288 = ssub.s32 %s18, %s25
    %p289 = scmp.eq.s32.totalorder %s288, 0
    %s291 = sadd.s32 %s290, 1
    %s292 = scalar_select %p289, %s290, %s291
    %p295 = pneg %p289
    %p296 = scmp.eq.s32.totalorder %s18, 1
    %p297 = por %p295, %p296
    %p298 = scmp.ne.s32.totalorder %s290, %s293
    %p299 = scmp.eq.s32.totalorder %s18, 0
    %p300 = por %p298, %p299
    %p301 = scmp.ne.s32.totalorder %s290, %s293
    %p302 = scmp.eq.s32.totalorder %s23, 1
    %p303 = por %p301, %p302
    %p304 = scmp.ne.s32.totalorder %s293, %s294
    %p305 = scmp.eq.s32.totalorder %s23, 0
    %p306 = por %p304, %p305
    %p307 = scmp.ne.s32.totalorder %s293, %s294
    %p308 = scmp.eq.s32.totalorder %s24, 1
    %p309 = por %p307, %p308
    %p311 = scmp.ne.s32.totalorder %s294, %s310
    %p312 = scmp.eq.s32.totalorder %s24, 0
    %p313 = por %p311, %p312
    %p314 = scmp.le.s32.totalorder 1, %s18
    %p315 = scmp.lt.s32.totalorder %s18, 3
    %p316 = pnand %p314, %p315
    %p317 = pneg %p316
    // Predicated region
    $region9: #{vae_forward.1} parent=5 // pred_check
      _
    $region10: #{vae_forward.1} parent=5 // pred_check_branch
      %319 = sbr.rel (%p316) target = $region12
    $region11: #{vae_forward.1} parent=5 // pred_region
      %s320 = ssub.s32 %s18, 1
      // Predicated region
      $region13: #{vae_forward.1} parent=11 // pred_check
        %p321 = pneg %p91
      $region14: #{vae_forward.1} parent=11 // pred_check_branch
        %323 = sbr.rel (%p321) target = $region16
      $region15: #{vae_forward.1} parent=11 // pred_region
        _
      $region16: #{vae_forward.1} parent=11 // pred_fallthru
        _
      // Predicated region
      $region17: #{vae_forward.1} parent=11 // pred_check
        %p324 = pneg %p112
      $region18: #{vae_forward.1} parent=11 // pred_check_branch
        %326 = sbr.rel (%p324) target = $region20
      $region19: #{vae_forward.1} parent=11 // pred_region
        _
      $region20: #{vae_forward.1} parent=11 // pred_fallthru
        _
      // Predicated region
      $region21: #{vae_forward.1} parent=11 // pred_check
        %p327 = pneg %p133
      $region22: #{vae_forward.1} parent=11 // pred_check_branch
        %329 = sbr.rel (%p327) target = $region24
      $region23: #{vae_forward.1} parent=11 // pred_region
        _
      $region24: #{vae_forward.1} parent=11 // pred_fallthru
        _
      // Predicated region
      $region25: #{vae_forward.1} parent=11 // pred_check
        %p330 = pneg %p154
      $region26: #{vae_forward.1} parent=11 // pred_check_branch
        %332 = sbr.rel (%p330) target = $region28
      $region27: #{vae_forward.1} parent=11 // pred_region
        _
      $region28: #{vae_forward.1} parent=11 // pred_fallthru
        _
      // Predicated region
      $region29: #{vae_forward.1} parent=11 // pred_check
        %p333 = pneg %p175
      $region30: #{vae_forward.1} parent=11 // pred_check_branch
        %335 = sbr.rel (%p333) target = $region32
      $region31: #{vae_forward.1} parent=11 // pred_region
        _
      $region32: #{vae_forward.1} parent=11 // pred_fallthru
        _
      // Predicated region
      $region33: #{vae_forward.1} parent=11 // pred_check
        %p336 = pneg %p196
      $region34: #{vae_forward.1} parent=11 // pred_check_branch
        %338 = sbr.rel (%p336) target = $region36
      $region35: #{vae_forward.1} parent=11 // pred_region
        _
      $region36: #{vae_forward.1} parent=11 // pred_fallthru
        _
      // Predicated region
      $region37: #{vae_forward.1} parent=11 // pred_check
        %p339 = pneg %p217
      $region38: #{vae_forward.1} parent=11 // pred_check_branch
        %341 = sbr.rel (%p339) target = $region40
      $region39: #{vae_forward.1} parent=11 // pred_region
        _
      $region40: #{vae_forward.1} parent=11 // pred_fallthru
        _
      // Predicated region
      $region41: #{vae_forward.1} parent=11 // pred_check
        %p342 = pneg %p238
      $region42: #{vae_forward.1} parent=11 // pred_check_branch
        %344 = sbr.rel (%p342) target = $region44
      $region43: #{vae_forward.1} parent=11 // pred_region
        _
      $region44: #{vae_forward.1} parent=11 // pred_fallthru
        _
      // Predicated region
      $region45: #{vae_forward.1} parent=11 // pred_check
        %p345 = pneg %p259
      $region46: #{vae_forward.1} parent=11 // pred_check_branch
        %347 = sbr.rel (%p345) target = $region48
      $region47: #{vae_forward.1} parent=11 // pred_region
        _
      $region48: #{vae_forward.1} parent=11 // pred_fallthru
        _
      // Predicated region
      $region49: #{vae_forward.1} parent=11 // pred_check
        %p348 = pneg %p280
      $region50: #{vae_forward.1} parent=11 // pred_check_branch
        %350 = sbr.rel (%p348) target = $region52
      $region51: #{vae_forward.1} parent=11 // pred_region
        _
      $region52: #{vae_forward.1} parent=11 // pred_fallthru
        _
    $region12: #{vae_forward.1} parent=5 // pred_fallthru
      _
    %p351 = scmp.lt.s32.totalorder %s18, 2
    // Predicated region
    $region53: #{vae_forward.1} parent=5 // pred_check
      %p352 = pneg %p351
    $region54: #{vae_forward.1} parent=5 // pred_check_branch
      %354 = sbr.rel (%p352) target = $region56
    $region55: #{vae_forward.1} parent=5 // pred_region
      // Predicated region
      $region57: #{vae_forward.1} parent=55 // pred_check
        %p355 = pneg %p38
      $region58: #{vae_forward.1} parent=55 // pred_check_branch
        %357 = sbr.rel (%p355) target = $region60
      $region59: #{vae_forward.1} parent=55 // pred_region
        %s358 = smul.u32 32, %s18
        %p359 = scmp.lt.s32.totalorder %s358, 63
        %s360 = scalar_select %p359, %s358, 63
        %s361 = smul.addr %s360, 8
        %s362 = scalar_lea.vmem %s0, %s361
        %s363 = smul.u32 32, %s18
      $region60: #{vae_forward.1} parent=55 // pred_fallthru
        _
      // Predicated region
      $region61: #{vae_forward.1} parent=55 // pred_check
        %p364 = pneg %p64
      $region62: #{vae_forward.1} parent=55 // pred_check_branch
        %366 = sbr.rel (%p364) target = $region64
      $region63: #{vae_forward.1} parent=55 // pred_region
        %s367 = smul.u32 32, %s18
        %p368 = scmp.lt.s32.totalorder %s367, 63
        %s369 = scalar_select %p368, %s367, 63
        %s370 = smul.addr %s369, 8
        %s371 = scalar_lea.vmem %s1, %s370
        %s372 = smul.u32 32, %s18
      $region64: #{vae_forward.1} parent=55 // pred_fallthru
        _
    $region56: #{vae_forward.1} parent=5 // pred_fallthru
      _
    %p373 = scmp.le.s32.totalorder 1, %s18
    %p374 = scmp.lt.s32.totalorder %s18, 3
    %p375 = pnand %p373, %p374
    %p376 = pneg %p375
    // Predicated region
    $region65: #{vae_forward.1} parent=5 // pred_check
      _
    $region66: #{vae_forward.1} parent=5 // pred_check_branch
      %378 = sbr.rel (%p375) target = $region68
    $region67: #{vae_forward.1} parent=5 // pred_region
      %s379 = ssub.s32 %s18, 1
      %s380 = smul.u32 32, %s23
      %p381 = scmp.lt.s32.totalorder %s380, 63
      %s382 = scalar_select %p381, %s380, 63
      %s383 = smul.addr %s382, 8
      %s384 = scalar_lea.vmem %s0, %s383
      %p385 = pneg %p44
      %p386 = pneg %p41
      %s387 = smul.u32 32, %s23
      %p388 = scmp.lt.s32.totalorder %s387, 63
      %s389 = scalar_select %p388, %s387, 63
      %s390 = smul.addr %s389, 8
      %s391 = scalar_lea.vmem %s1, %s390
      %p392 = pneg %p70
      %p393 = pneg %p67
      %p394 = pneg %p91
      %p395 = pneg %p88
      %p396 = pneg %p112
      %p397 = pneg %p109
      %p398 = pneg %p133
      %p399 = pneg %p130
      %p400 = pneg %p154
      %p401 = pneg %p151
      %p402 = pneg %p175
      %p403 = pneg %p172
      %p404 = pneg %p196
      %p405 = pneg %p193
      %p406 = pneg %p217
      %p407 = pneg %p214
      %p408 = pneg %p238
      %p409 = pneg %p235
      %p410 = pneg %p259
      %p411 = pneg %p256
      %p412 = pneg %p280
      %p413 = pneg %p277
      %p414 = pneg %p306
      %p415 = pneg %p303
      %s416 = smul.u32 32, %s23
      %p417 = scmp.lt.s32.totalorder %s416, 63
      %s418 = scalar_select %p417, %s416, 63
      %s419 = smul.addr %s418, 4
      %s420 = smul.addr %s419, 8
      %s421 = scalar_lea.vmem %s12, %s420
      %s422 = smul.u32 32, %s23
      %p423 = scmp.lt.s32.totalorder %s422, 63
      %s424 = scalar_select %p423, %s422, 63
      %s425 = smul.addr %s424, 8
      %s426 = scalar_lea.vmem %s0, %s425
      %s427 = smul.u32 32, %s23
      %s428 = smul.u32 32, %s23
      %p429 = scmp.lt.s32.totalorder %s428, 63
      %s430 = scalar_select %p429, %s428, 63
      %s431 = smul.addr %s430, 8
      %s432 = scalar_lea.vmem %s1, %s431
      %s433 = smul.u32 32, %s23
      %s434 = smul.u32 32, %s23
      %p435 = scmp.lt.s32.totalorder %s434, 63
      %s436 = scalar_select %p435, %s434, 63
      %s437 = smul.addr %s436, 4
      %s438 = smul.addr %s437, 8
      %s439 = scalar_lea.vmem %s12, %s438
      %s440 = smul.u32 32, %s23
      %v441 = vld [vmem:[%s426] sm:$0xff]
      %v442 = vld [vmem:[%s426 + $0x8] sm:$0xff]
      %v443 = vld [vmem:[%s426 + $0x10] sm:$0xff]
      %v444 = vld [vmem:[%s426 + $0x18] sm:$0xff]
      %v445 = vld [vmem:[%s426 + $0x20] sm:$0xff]
      %v446 = vld [vmem:[%s426 + $0x28] sm:$0xff]
      %v447 = vld [vmem:[%s426 + $0x30] sm:$0xff]
      %v448 = vld [vmem:[%s426 + $0x38] sm:$0xff]
      %v449 = vld [vmem:[%s426 + $0x40] sm:$0xff]
      %v450 = vld [vmem:[%s426 + $0x48] sm:$0xff]
      %v451 = vld [vmem:[%s426 + $0x50] sm:$0xff]
      %v452 = vld [vmem:[%s426 + $0x58] sm:$0xff]
      %v453 = vld [vmem:[%s426 + $0x60] sm:$0xff]
      %v454 = vld [vmem:[%s426 + $0x68] sm:$0xff]
      %v455 = vld [vmem:[%s426 + $0x70] sm:$0xff]
      %v456 = vld [vmem:[%s426 + $0x78] sm:$0xff]
      %v457 = vld [vmem:[%s426 + $0x80] sm:$0xff]
      %v458 = vld [vmem:[%s426 + $0x88] sm:$0xff]
      %v459 = vld [vmem:[%s426 + $0x90] sm:$0xff]
      %v460 = vld [vmem:[%s426 + $0x98] sm:$0xff]
      %v461 = vld [vmem:[%s426 + $0xa0] sm:$0xff]
      %v462 = vld [vmem:[%s426 + $0xa8] sm:$0xff]
      %v463 = vld [vmem:[%s426 + $0xb0] sm:$0xff]
      %v464 = vld [vmem:[%s426 + $0xb8] sm:$0xff]
      %v465 = vld [vmem:[%s426 + $0xc0] sm:$0xff]
      %v466 = vld [vmem:[%s426 + $0xc8] sm:$0xff]
      %v467 = vld [vmem:[%s426 + $0xd0] sm:$0xff]
      %v468 = vld [vmem:[%s426 + $0xd8] sm:$0xff]
      %v469 = vld [vmem:[%s426 + $0xe0] sm:$0xff]
      %v470 = vld [vmem:[%s426 + $0xe8] sm:$0xff]
      %v471 = vld [vmem:[%s426 + $0xf0] sm:$0xff]
      %v472 = vld [vmem:[%s426 + $0xf8] sm:$0xff]
      %v473 = vpack.c.bf16 %v442, %v441
      %v474 = vpack.c.bf16 %v444, %v443
      %v475 = vpack.c.bf16 %v446, %v445
      %v476 = vpack.c.bf16 %v448, %v447
      %v477 = vpack.c.bf16 %v450, %v449
      %v478 = vpack.c.bf16 %v452, %v451
      %v479 = vpack.c.bf16 %v454, %v453
      %v480 = vpack.c.bf16 %v456, %v455
      %v481 = vpack.c.bf16 %v458, %v457
      %v482 = vpack.c.bf16 %v460, %v459
      %v483 = vpack.c.bf16 %v462, %v461
      %v484 = vpack.c.bf16 %v464, %v463
      %v485 = vpack.c.bf16 %v466, %v465
      %v486 = vpack.c.bf16 %v468, %v467
      %v487 = vpack.c.bf16 %v470, %v469
      %v488 = vpack.c.bf16 %v472, %v471
      %v489 = vld [vmem:[%s2] sm:$0xf]
      %v490 = vld [vmem:[%s2 + $0x4] sm:$0xf]
      %v491 = vld [vmem:[%s2 + $0x8] sm:$0xf]
      %v492 = vld [vmem:[%s2 + $0xc] sm:$0xf]
      %v493 = vld [vmem:[%s2 + $0x10] sm:$0xf]
      %v494 = vld [vmem:[%s2 + $0x14] sm:$0xf]
      %v495 = vld [vmem:[%s2 + $0x18] sm:$0xf]
      %v496 = vld [vmem:[%s2 + $0x1c] sm:$0xf]
      %v497 = vld [vmem:[%s2 + $0x20] sm:$0xf]
      %v498 = vld [vmem:[%s2 + $0x24] sm:$0xf]
      %v499 = vld [vmem:[%s2 + $0x28] sm:$0xf]
      %v500 = vld [vmem:[%s2 + $0x2c] sm:$0xf]
      %v501 = vld [vmem:[%s2 + $0x30] sm:$0xf]
      %v502 = vld [vmem:[%s2 + $0x34] sm:$0xf]
      %v503 = vld [vmem:[%s2 + $0x38] sm:$0xf]
      %v504 = vld [vmem:[%s2 + $0x3c] sm:$0xf]
      %v505 = vld [vmem:[%s3] sm:$0x1]
      %v507 = vperm.slane %v505, 0
      %v525 = vunpack.c.l.b16 %v489
      %v526 = vunpack.c.l.b16 %v490
      %v527 = vunpack.c.l.b16 %v491
      %v528 = vunpack.c.l.b16 %v492
      %v529 = vunpack.c.l.b16 %v493
      %v530 = vunpack.c.l.b16 %v494
      %v531 = vunpack.c.l.b16 %v495
      %v532 = vunpack.c.l.b16 %v496
      %v533 = vunpack.c.l.b16 %v497
      %v534 = vunpack.c.l.b16 %v498
      %v535 = vunpack.c.l.b16 %v499
      %v536 = vunpack.c.l.b16 %v500
      %v537 = vunpack.c.l.b16 %v501
      %v538 = vunpack.c.l.b16 %v502
      %v539 = vunpack.c.l.b16 %v503
      %v540 = vunpack.c.l.b16 %v504
      %v541 = vpack.c.b16 %v526, %v525
      %v542 = vpack.c.b16 %v528, %v527
      %v543 = vpack.c.b16 %v530, %v529
      %v544 = vpack.c.b16 %v532, %v531
      %v545 = vpack.c.b16 %v534, %v533
      %v546 = vpack.c.b16 %v536, %v535
      %v547 = vpack.c.b16 %v538, %v537
      %v548 = vpack.c.b16 %v540, %v539
      %557 = vmatpush.bf16.msra.mxu0 %v548
      %558 = vmatpush.bf16.msra.mxu0 %v547
      %559 = vmatpush.bf16.msra.mxu0 %v546
      %560 = vmatpush.bf16.msra.mxu0 %v545
      %561 = vmatpush.bf16.msra.mxu0 %v544
      %562 = vmatpush.bf16.msra.mxu0 %v543
      %563 = vmatpush.bf16.msra.mxu0 %v542
      %564 = vmatpush.bf16.msra.mxu0 %v541
      %565 = vmatmul.bf16.gmra.mxu0 %v473
      %v566 = vpop.f32.mrf.mxu0
      %v567 = vadd.f32 %v507, %v566
      %v568 = vpop.f32.mrf.mxu0
      %v569 = vadd.f32 %v507, %v568
      %570 = vmatmul.bf16.gmra.mxu0 %v474
      %v571 = vpop.f32.mrf.mxu0
      %v572 = vadd.f32 %v507, %v571
      %v573 = vpop.f32.mrf.mxu0
      %v574 = vadd.f32 %v507, %v573
      %575 = vmatmul.bf16.gmra.mxu0 %v475
      %v576 = vpop.f32.mrf.mxu0
      %v577 = vadd.f32 %v507, %v576
      %v578 = vpop.f32.mrf.mxu0
      %v579 = vadd.f32 %v507, %v578
      %580 = vmatmul.bf16.gmra.mxu0 %v476
      %v581 = vpop.f32.mrf.mxu0
      %v582 = vadd.f32 %v507, %v581
      %v583 = vpop.f32.mrf.mxu0
      %v584 = vadd.f32 %v507, %v583
      %585 = vmatmul.bf16.gmra.mxu0 %v477
      %v586 = vpop.f32.mrf.mxu0
      %v587 = vadd.f32 %v507, %v586
      %v588 = vpop.f32.mrf.mxu0
      %v589 = vadd.f32 %v507, %v588
      %590 = vmatmul.bf16.gmra.mxu0 %v478
      %v591 = vpop.f32.mrf.mxu0
      %v592 = vadd.f32 %v507, %v591
      %v593 = vpop.f32.mrf.mxu0
      %v594 = vadd.f32 %v507, %v593
      %595 = vmatmul.bf16.gmra.mxu0 %v479
      %v596 = vpop.f32.mrf.mxu0
      %v597 = vadd.f32 %v507, %v596
      %v598 = vpop.f32.mrf.mxu0
      %v599 = vadd.f32 %v507, %v598
      %600 = vmatmul.bf16.gmra.mxu0 %v480
      %v601 = vpop.f32.mrf.mxu0
      %v602 = vadd.f32 %v507, %v601
      %v603 = vpop.f32.mrf.mxu0
      %v604 = vadd.f32 %v507, %v603
      %605 = vmatmul.bf16.gmra.mxu0 %v481
      %v606 = vpop.f32.mrf.mxu0
      %v607 = vadd.f32 %v507, %v606
      %v608 = vpop.f32.mrf.mxu0
      %v609 = vadd.f32 %v507, %v608
      %610 = vmatmul.bf16.gmra.mxu0 %v482
      %v611 = vpop.f32.mrf.mxu0
      %v612 = vadd.f32 %v507, %v611
      %v613 = vpop.f32.mrf.mxu0
      %v614 = vadd.f32 %v507, %v613
      %615 = vmatmul.bf16.gmra.mxu0 %v483
      %v616 = vpop.f32.mrf.mxu0
      %v617 = vadd.f32 %v507, %v616
      %v618 = vpop.f32.mrf.mxu0
      %v619 = vadd.f32 %v507, %v618
      %620 = vmatmul.bf16.gmra.mxu0 %v484
      %v621 = vpop.f32.mrf.mxu0
      %v622 = vadd.f32 %v507, %v621
      %v623 = vpop.f32.mrf.mxu0
      %v624 = vadd.f32 %v507, %v623
      %625 = vmatmul.bf16.gmra.mxu0 %v485
      %v626 = vpop.f32.mrf.mxu0
      %v627 = vadd.f32 %v507, %v626
      %v628 = vpop.f32.mrf.mxu0
      %v629 = vadd.f32 %v507, %v628
      %630 = vmatmul.bf16.gmra.mxu0 %v486
      %v631 = vpop.f32.mrf.mxu0
      %v632 = vadd.f32 %v507, %v631
      %v633 = vpop.f32.mrf.mxu0
      %v634 = vadd.f32 %v507, %v633
      %635 = vmatmul.bf16.gmra.mxu0 %v487
      %v636 = vpop.f32.mrf.mxu0
      %v637 = vadd.f32 %v507, %v636
      %v638 = vpop.f32.mrf.mxu0
      %v639 = vadd.f32 %v507, %v638
      %640 = vmatmul.bf16.gmra.mxu0 %v488
      %v641 = vpop.f32.mrf.mxu0
      %v642 = vadd.f32 %v507, %v641
      %v643 = vpop.f32.mrf.mxu0
      %v644 = vadd.f32 %v507, %v643
      %645 = vdwg.mxu0
      %v646 = vtanh.pop %v567
      %v647 = vtanh.pop %v569
      %v648 = vtanh.pop %v572
      %v649 = vtanh.pop %v574
      %v650 = vtanh.pop %v577
      %v651 = vtanh.pop %v579
      %v652 = vtanh.pop %v582
      %v653 = vtanh.pop %v584
      %v654 = vtanh.pop %v587
      %v655 = vtanh.pop %v589
      %v656 = vtanh.pop %v592
      %v657 = vtanh.pop %v594
      %v658 = vtanh.pop %v597
      %v659 = vtanh.pop %v599
      %v660 = vtanh.pop %v602
      %v661 = vtanh.pop %v604
      %v662 = vtanh.pop %v607
      %v663 = vtanh.pop %v609
      %v664 = vtanh.pop %v612
      %v665 = vtanh.pop %v614
      %v666 = vtanh.pop %v617
      %v667 = vtanh.pop %v619
      %v668 = vtanh.pop %v622
      %v669 = vtanh.pop %v624
      %v670 = vtanh.pop %v627
      %v671 = vtanh.pop %v629
      %v672 = vtanh.pop %v632
      %v673 = vtanh.pop %v634
      %v674 = vtanh.pop %v637
      %v675 = vtanh.pop %v639
      %v676 = vtanh.pop %v642
      %v677 = vtanh.pop %v644
      %v678 = vpack.c.bf16 %v647, %v646
      %v679 = vpack.c.bf16 %v649, %v648
      %v680 = vpack.c.bf16 %v651, %v650
      %v681 = vpack.c.bf16 %v653, %v652
      %v682 = vpack.c.bf16 %v655, %v654
      %v683 = vpack.c.bf16 %v657, %v656
      %v684 = vpack.c.bf16 %v659, %v658
      %v685 = vpack.c.bf16 %v661, %v660
      %v686 = vpack.c.bf16 %v663, %v662
      %v687 = vpack.c.bf16 %v665, %v664
      %v688 = vpack.c.bf16 %v667, %v666
      %v689 = vpack.c.bf16 %v669, %v668
      %v690 = vpack.c.bf16 %v671, %v670
      %v691 = vpack.c.bf16 %v673, %v672
      %v692 = vpack.c.bf16 %v675, %v674
      %v693 = vpack.c.bf16 %v677, %v676
      %v694 = vld [vmem:[%s4] sm:$0xf]
      %v695 = vld [vmem:[%s4 + $0x4] sm:$0xf]
      %v696 = vld [vmem:[%s4 + $0x8] sm:$0xf]
      %v697 = vld [vmem:[%s4 + $0xc] sm:$0xf]
      %v698 = vld [vmem:[%s4 + $0x10] sm:$0xf]
      %v699 = vld [vmem:[%s4 + $0x14] sm:$0xf]
      %v700 = vld [vmem:[%s4 + $0x18] sm:$0xf]
      %v701 = vld [vmem:[%s4 + $0x1c] sm:$0xf]
      %v702 = vld [vmem:[%s4 + $0x20] sm:$0xf]
      %v703 = vld [vmem:[%s4 + $0x24] sm:$0xf]
      %v704 = vld [vmem:[%s4 + $0x28] sm:$0xf]
      %v705 = vld [vmem:[%s4 + $0x2c] sm:$0xf]
      %v706 = vld [vmem:[%s4 + $0x30] sm:$0xf]
      %v707 = vld [vmem:[%s4 + $0x34] sm:$0xf]
      %v708 = vld [vmem:[%s4 + $0x38] sm:$0xf]
      %v709 = vld [vmem:[%s4 + $0x3c] sm:$0xf]
      %v710 = vld [vmem:[%s5] sm:$0x1]
      %v712 = vperm.slane %v710, 0
      %v730 = vunpack.c.l.b16 %v694
      %v731 = vunpack.c.l.b16 %v695
      %v732 = vunpack.c.l.b16 %v696
      %v733 = vunpack.c.l.b16 %v697
      %v734 = vunpack.c.l.b16 %v698
      %v735 = vunpack.c.l.b16 %v699
      %v736 = vunpack.c.l.b16 %v700
      %v737 = vunpack.c.l.b16 %v701
      %v738 = vunpack.c.l.b16 %v702
      %v739 = vunpack.c.l.b16 %v703
      %v740 = vunpack.c.l.b16 %v704
      %v741 = vunpack.c.l.b16 %v705
      %v742 = vunpack.c.l.b16 %v706
      %v743 = vunpack.c.l.b16 %v707
      %v744 = vunpack.c.l.b16 %v708
      %v745 = vunpack.c.l.b16 %v709
      %v746 = vpack.c.b16 %v731, %v730
      %v747 = vpack.c.b16 %v733, %v732
      %v748 = vpack.c.b16 %v735, %v734
      %v749 = vpack.c.b16 %v737, %v736
      %v750 = vpack.c.b16 %v739, %v738
      %v751 = vpack.c.b16 %v741, %v740
      %v752 = vpack.c.b16 %v743, %v742
      %v753 = vpack.c.b16 %v745, %v744
      %762 = vmatpush.bf16.msra.mxu0 %v753
      %763 = vmatpush.bf16.msra.mxu0 %v752
      %764 = vmatpush.bf16.msra.mxu0 %v751
      %765 = vmatpush.bf16.msra.mxu0 %v750
      %766 = vmatpush.bf16.msra.mxu0 %v749
      %767 = vmatpush.bf16.msra.mxu0 %v748
      %768 = vmatpush.bf16.msra.mxu0 %v747
      %769 = vmatpush.bf16.msra.mxu0 %v746
      %770 = vmatmul.bf16.gmra.mxu0 %v678
      %v771 = vpop.f32.mrf.mxu0
      %v772 = vadd.f32 %v712, %v771
      %v773 = vpop.f32.mrf.mxu0
      %v774 = vadd.f32 %v712, %v773
      %775 = vmatmul.bf16.gmra.mxu0 %v679
      %v776 = vpop.f32.mrf.mxu0
      %v777 = vadd.f32 %v712, %v776
      %v778 = vpop.f32.mrf.mxu0
      %v779 = vadd.f32 %v712, %v778
      %780 = vmatmul.bf16.gmra.mxu0 %v680
      %v781 = vpop.f32.mrf.mxu0
      %v782 = vadd.f32 %v712, %v781
      %v783 = vpop.f32.mrf.mxu0
      %v784 = vadd.f32 %v712, %v783
      %785 = vmatmul.bf16.gmra.mxu0 %v681
      %v786 = vpop.f32.mrf.mxu0
      %v787 = vadd.f32 %v712, %v786
      %v788 = vpop.f32.mrf.mxu0
      %v789 = vadd.f32 %v712, %v788
      %790 = vmatmul.bf16.gmra.mxu0 %v682
      %v791 = vpop.f32.mrf.mxu0
      %v792 = vadd.f32 %v712, %v791
      %v793 = vpop.f32.mrf.mxu0
      %v794 = vadd.f32 %v712, %v793
      %795 = vmatmul.bf16.gmra.mxu0 %v683
      %v796 = vpop.f32.mrf.mxu0
      %v797 = vadd.f32 %v712, %v796
      %v798 = vpop.f32.mrf.mxu0
      %v799 = vadd.f32 %v712, %v798
      %800 = vmatmul.bf16.gmra.mxu0 %v684
      %v801 = vpop.f32.mrf.mxu0
      %v802 = vadd.f32 %v712, %v801
      %v803 = vpop.f32.mrf.mxu0
      %v804 = vadd.f32 %v712, %v803
      %805 = vmatmul.bf16.gmra.mxu0 %v685
      %v806 = vpop.f32.mrf.mxu0
      %v807 = vadd.f32 %v712, %v806
      %v808 = vpop.f32.mrf.mxu0
      %v809 = vadd.f32 %v712, %v808
      %810 = vmatmul.bf16.gmra.mxu0 %v686
      %v811 = vpop.f32.mrf.mxu0
      %v812 = vadd.f32 %v712, %v811
      %v813 = vpop.f32.mrf.mxu0
      %v814 = vadd.f32 %v712, %v813
      %815 = vmatmul.bf16.gmra.mxu0 %v687
      %v816 = vpop.f32.mrf.mxu0
      %v817 = vadd.f32 %v712, %v816
      %v818 = vpop.f32.mrf.mxu0
      %v819 = vadd.f32 %v712, %v818
      %820 = vmatmul.bf16.gmra.mxu0 %v688
      %v821 = vpop.f32.mrf.mxu0
      %v822 = vadd.f32 %v712, %v821
      %v823 = vpop.f32.mrf.mxu0
      %v824 = vadd.f32 %v712, %v823
      %825 = vmatmul.bf16.gmra.mxu0 %v689
      %v826 = vpop.f32.mrf.mxu0
      %v827 = vadd.f32 %v712, %v826
      %v828 = vpop.f32.mrf.mxu0
      %v829 = vadd.f32 %v712, %v828
      %830 = vmatmul.bf16.gmra.mxu0 %v690
      %v831 = vpop.f32.mrf.mxu0
      %v832 = vadd.f32 %v712, %v831
      %v833 = vpop.f32.mrf.mxu0
      %v834 = vadd.f32 %v712, %v833
      %835 = vmatmul.bf16.gmra.mxu0 %v691
      %v836 = vpop.f32.mrf.mxu0
      %v837 = vadd.f32 %v712, %v836
      %v838 = vpop.f32.mrf.mxu0
      %v839 = vadd.f32 %v712, %v838
      %840 = vmatmul.bf16.gmra.mxu0 %v692
      %v841 = vpop.f32.mrf.mxu0
      %v842 = vadd.f32 %v712, %v841
      %v843 = vpop.f32.mrf.mxu0
      %v844 = vadd.f32 %v712, %v843
      %845 = vmatmul.bf16.gmra.mxu0 %v693
      %v846 = vpop.f32.mrf.mxu0
      %v847 = vadd.f32 %v712, %v846
      %v848 = vpop.f32.mrf.mxu0
      %v849 = vadd.f32 %v712, %v848
      %850 = vdwg.mxu0
      %v851 = vtanh.pop %v772
      %v852 = vtanh.pop %v774
      %v853 = vtanh.pop %v777
      %v854 = vtanh.pop %v779
      %v855 = vtanh.pop %v782
      %v856 = vtanh.pop %v784
      %v857 = vtanh.pop %v787
      %v858 = vtanh.pop %v789
      %v859 = vtanh.pop %v792
      %v860 = vtanh.pop %v794
      %v861 = vtanh.pop %v797
      %v862 = vtanh.pop %v799
      %v863 = vtanh.pop %v802
      %v864 = vtanh.pop %v804
      %v865 = vtanh.pop %v807
      %v866 = vtanh.pop %v809
      %v867 = vtanh.pop %v812
      %v868 = vtanh.pop %v814
      %v869 = vtanh.pop %v817
      %v870 = vtanh.pop %v819
      %v871 = vtanh.pop %v822
      %v872 = vtanh.pop %v824
      %v873 = vtanh.pop %v827
      %v874 = vtanh.pop %v829
      %v875 = vtanh.pop %v832
      %v876 = vtanh.pop %v834
      %v877 = vtanh.pop %v837
      %v878 = vtanh.pop %v839
      %v879 = vtanh.pop %v842
      %v880 = vtanh.pop %v844
      %v881 = vtanh.pop %v847
      %v882 = vtanh.pop %v849
      %v883 = vpack.c.bf16 %v852, %v851
      %v884 = vpack.c.bf16 %v854, %v853
      %v885 = vpack.c.bf16 %v856, %v855
      %v886 = vpack.c.bf16 %v858, %v857
      %v887 = vpack.c.bf16 %v860, %v859
      %v888 = vpack.c.bf16 %v862, %v861
      %v889 = vpack.c.bf16 %v864, %v863
      %v890 = vpack.c.bf16 %v866, %v865
      %v891 = vpack.c.bf16 %v868, %v867
      %v892 = vpack.c.bf16 %v870, %v869
      %v893 = vpack.c.bf16 %v872, %v871
      %v894 = vpack.c.bf16 %v874, %v873
      %v895 = vpack.c.bf16 %v876, %v875
      %v896 = vpack.c.bf16 %v878, %v877
      %v897 = vpack.c.bf16 %v880, %v879
      %v898 = vpack.c.bf16 %v882, %v881
      %v899 = vld [vmem:[%s6] sm:$0xff]
      %v900 = vld [vmem:[%s6 + $0x8] sm:$0xff]
      %v901 = vld [vmem:[%s6 + $0x10] sm:$0xff]
      %v902 = vld [vmem:[%s6 + $0x18] sm:$0xff]
      %v903 = vld [vmem:[%s6 + $0x20] sm:$0xff]
      %v904 = vld [vmem:[%s6 + $0x28] sm:$0xff]
      %v905 = vld [vmem:[%s6 + $0x30] sm:$0xff]
      %v906 = vld [vmem:[%s6 + $0x38] sm:$0xff]
      %v907 = vld [vmem:[%s6 + $0x40] sm:$0xff]
      %v908 = vld [vmem:[%s6 + $0x48] sm:$0xff]
      %v909 = vld [vmem:[%s6 + $0x50] sm:$0xff]
      %v910 = vld [vmem:[%s6 + $0x58] sm:$0xff]
      %v911 = vld [vmem:[%s6 + $0x60] sm:$0xff]
      %v912 = vld [vmem:[%s6 + $0x68] sm:$0xff]
      %v913 = vld [vmem:[%s6 + $0x70] sm:$0xff]
      %v914 = vld [vmem:[%s6 + $0x78] sm:$0xff]
      %v915 = vld [vmem:[%s7] sm:$0x3]
      %v917 = vperm.slane %v915, 0
      %v918 = vperm.slane %v915, 1
      %v937 = vunpack.c.l.b16 %v899
      %v938 = vunpack.c.h.b16 %v899
      %v939 = vunpack.c.l.b16 %v900
      %v940 = vunpack.c.h.b16 %v900
      %v941 = vunpack.c.l.b16 %v901
      %v942 = vunpack.c.h.b16 %v901
      %v943 = vunpack.c.l.b16 %v902
      %v944 = vunpack.c.h.b16 %v902
      %v945 = vunpack.c.l.b16 %v903
      %v946 = vunpack.c.h.b16 %v903
      %v947 = vunpack.c.l.b16 %v904
      %v948 = vunpack.c.h.b16 %v904
      %v949 = vunpack.c.l.b16 %v905
      %v950 = vunpack.c.h.b16 %v905
      %v951 = vunpack.c.l.b16 %v906
      %v952 = vunpack.c.h.b16 %v906
      %v953 = vunpack.c.l.b16 %v907
      %v954 = vunpack.c.h.b16 %v907
      %v955 = vunpack.c.l.b16 %v908
      %v956 = vunpack.c.h.b16 %v908
      %v957 = vunpack.c.l.b16 %v909
      %v958 = vunpack.c.h.b16 %v909
      %v959 = vunpack.c.l.b16 %v910
      %v960 = vunpack.c.h.b16 %v910
      %v961 = vunpack.c.l.b16 %v911
      %v962 = vunpack.c.h.b16 %v911
      %v963 = vunpack.c.l.b16 %v912
      %v964 = vunpack.c.h.b16 %v912
      %v965 = vunpack.c.l.b16 %v913
      %v966 = vunpack.c.h.b16 %v913
      %v967 = vunpack.c.l.b16 %v914
      %v968 = vunpack.c.h.b16 %v914
      %v969 = vpack.c.b16 %v939, %v937
      %v970 = vpack.c.b16 %v940, %v938
      %v971 = vpack.c.b16 %v943, %v941
      %v972 = vpack.c.b16 %v944, %v942
      %v973 = vpack.c.b16 %v947, %v945
      %v974 = vpack.c.b16 %v948, %v946
      %v975 = vpack.c.b16 %v951, %v949
      %v976 = vpack.c.b16 %v952, %v950
      %v977 = vpack.c.b16 %v955, %v953
      %v978 = vpack.c.b16 %v956, %v954
      %v979 = vpack.c.b16 %v959, %v957
      %v980 = vpack.c.b16 %v960, %v958
      %v981 = vpack.c.b16 %v963, %v961
      %v982 = vpack.c.b16 %v964, %v962
      %v983 = vpack.c.b16 %v967, %v965
      %v984 = vpack.c.b16 %v968, %v966
      %1001 = vmatpush.bf16.msra.mxu0 %v983
      %1002 = vmatpush.bf16.msra.mxu0 %v981
      %1003 = vmatpush.bf16.msra.mxu0 %v979
      %1004 = vmatpush.bf16.msra.mxu0 %v977
      %1005 = vmatpush.bf16.msra.mxu0 %v975
      %1006 = vmatpush.bf16.msra.mxu0 %v973
      %1007 = vmatpush.bf16.msra.mxu0 %v971
      %1008 = vmatpush.bf16.msra.mxu0 %v969
      %1009 = vmatmul.bf16.gmra.mxu0 %v883
      %v1010 = vpop.f32.mrf.mxu0
      %v1011 = vadd.f32 %v917, %v1010
      %v1012 = vpop.f32.mrf.mxu0
      %v1013 = vadd.f32 %v917, %v1012
      %1014 = vmatmul.bf16.gmra.mxu0 %v884
      %v1015 = vpop.f32.mrf.mxu0
      %v1016 = vadd.f32 %v917, %v1015
      %v1017 = vpop.f32.mrf.mxu0
      %v1018 = vadd.f32 %v917, %v1017
      %1019 = vmatmul.bf16.gmra.mxu0 %v885
      %v1020 = vpop.f32.mrf.mxu0
      %v1021 = vadd.f32 %v917, %v1020
      %v1022 = vpop.f32.mrf.mxu0
      %v1023 = vadd.f32 %v917, %v1022
      %1024 = vmatmul.bf16.gmra.mxu0 %v886
      %v1025 = vpop.f32.mrf.mxu0
      %v1026 = vadd.f32 %v917, %v1025
      %v1027 = vpop.f32.mrf.mxu0
      %v1028 = vadd.f32 %v917, %v1027
      %1029 = vmatmul.bf16.gmra.mxu0 %v887
      %v1030 = vpop.f32.mrf.mxu0
      %v1031 = vadd.f32 %v917, %v1030
      %v1032 = vpop.f32.mrf.mxu0
      %v1033 = vadd.f32 %v917, %v1032
      %1034 = vmatmul.bf16.gmra.mxu0 %v888
      %v1035 = vpop.f32.mrf.mxu0
      %v1036 = vadd.f32 %v917, %v1035
      %v1037 = vpop.f32.mrf.mxu0
      %v1038 = vadd.f32 %v917, %v1037
      %1039 = vmatmul.bf16.gmra.mxu0 %v889
      %v1040 = vpop.f32.mrf.mxu0
      %v1041 = vadd.f32 %v917, %v1040
      %v1042 = vpop.f32.mrf.mxu0
      %v1043 = vadd.f32 %v917, %v1042
      %1044 = vmatmul.bf16.gmra.mxu0 %v890
      %v1045 = vpop.f32.mrf.mxu0
      %v1046 = vadd.f32 %v917, %v1045
      %v1047 = vpop.f32.mrf.mxu0
      %v1048 = vadd.f32 %v917, %v1047
      %1049 = vmatmul.bf16.gmra.mxu0 %v891
      %v1050 = vpop.f32.mrf.mxu0
      %v1051 = vadd.f32 %v917, %v1050
      %v1052 = vpop.f32.mrf.mxu0
      %v1053 = vadd.f32 %v917, %v1052
      %1054 = vmatmul.bf16.gmra.mxu0 %v892
      %v1055 = vpop.f32.mrf.mxu0
      %v1056 = vadd.f32 %v917, %v1055
      %v1057 = vpop.f32.mrf.mxu0
      %v1058 = vadd.f32 %v917, %v1057
      %1059 = vmatmul.bf16.gmra.mxu0 %v893
      %v1060 = vpop.f32.mrf.mxu0
      %v1061 = vadd.f32 %v917, %v1060
      %v1062 = vpop.f32.mrf.mxu0
      %v1063 = vadd.f32 %v917, %v1062
      %1064 = vmatmul.bf16.gmra.mxu0 %v894
      %v1065 = vpop.f32.mrf.mxu0
      %v1066 = vadd.f32 %v917, %v1065
      %v1067 = vpop.f32.mrf.mxu0
      %v1068 = vadd.f32 %v917, %v1067
      %1069 = vmatmul.bf16.gmra.mxu0 %v895
      %v1070 = vpop.f32.mrf.mxu0
      %v1071 = vadd.f32 %v917, %v1070
      %v1072 = vpop.f32.mrf.mxu0
      %v1073 = vadd.f32 %v917, %v1072
      %1074 = vmatmul.bf16.gmra.mxu0 %v896
      %v1075 = vpop.f32.mrf.mxu0
      %v1076 = vadd.f32 %v917, %v1075
      %v1077 = vpop.f32.mrf.mxu0
      %v1078 = vadd.f32 %v917, %v1077
      %1079 = vmatmul.bf16.gmra.mxu0 %v897
      %v1080 = vpop.f32.mrf.mxu0
      %v1081 = vadd.f32 %v917, %v1080
      %v1082 = vpop.f32.mrf.mxu0
      %v1083 = vadd.f32 %v917, %v1082
      %1084 = vmatmul.bf16.gmra.mxu0 %v898
      %v1085 = vpop.f32.mrf.mxu0
      %v1086 = vadd.f32 %v917, %v1085
      %v1087 = vpop.f32.mrf.mxu0
      %v1088 = vadd.f32 %v917, %v1087
      %1089 = vdwg.mxu0
      %1090 = vmatpush.bf16.msra.mxu0 %v984
      %1091 = vmatpush.bf16.msra.mxu0 %v982
      %1092 = vmatpush.bf16.msra.mxu0 %v980
      %1093 = vmatpush.bf16.msra.mxu0 %v978
      %1094 = vmatpush.bf16.msra.mxu0 %v976
      %1095 = vmatpush.bf16.msra.mxu0 %v974
      %1096 = vmatpush.bf16.msra.mxu0 %v972
      %1097 = vmatpush.bf16.msra.mxu0 %v970
      %1098 = vmatmul.bf16.gmra.mxu0 %v883
      %v1099 = vpop.f32.mrf.mxu0
      %v1100 = vadd.f32 %v918, %v1099
      %v1101 = vpop.f32.mrf.mxu0
      %v1102 = vadd.f32 %v918, %v1101
      %1103 = vmatmul.bf16.gmra.mxu0 %v884
      %v1104 = vpop.f32.mrf.mxu0
      %v1105 = vadd.f32 %v918, %v1104
      %v1106 = vpop.f32.mrf.mxu0
      %v1107 = vadd.f32 %v918, %v1106
      %1108 = vmatmul.bf16.gmra.mxu0 %v885
      %v1109 = vpop.f32.mrf.mxu0
      %v1110 = vadd.f32 %v918, %v1109
      %v1111 = vpop.f32.mrf.mxu0
      %v1112 = vadd.f32 %v918, %v1111
      %1113 = vmatmul.bf16.gmra.mxu0 %v886
      %v1114 = vpop.f32.mrf.mxu0
      %v1115 = vadd.f32 %v918, %v1114
      %v1116 = vpop.f32.mrf.mxu0
      %v1117 = vadd.f32 %v918, %v1116
      %1118 = vmatmul.bf16.gmra.mxu0 %v887
      %v1119 = vpop.f32.mrf.mxu0
      %v1120 = vadd.f32 %v918, %v1119
      %v1121 = vpop.f32.mrf.mxu0
      %v1122 = vadd.f32 %v918, %v1121
      %1123 = vmatmul.bf16.gmra.mxu0 %v888
      %v1124 = vpop.f32.mrf.mxu0
      %v1125 = vadd.f32 %v918, %v1124
      %v1126 = vpop.f32.mrf.mxu0
      %v1127 = vadd.f32 %v918, %v1126
      %1128 = vmatmul.bf16.gmra.mxu0 %v889
      %v1129 = vpop.f32.mrf.mxu0
      %v1130 = vadd.f32 %v918, %v1129
      %v1131 = vpop.f32.mrf.mxu0
      %v1132 = vadd.f32 %v918, %v1131
      %1133 = vmatmul.bf16.gmra.mxu0 %v890
      %v1134 = vpop.f32.mrf.mxu0
      %v1135 = vadd.f32 %v918, %v1134
      %v1136 = vpop.f32.mrf.mxu0
      %v1137 = vadd.f32 %v918, %v1136
      %1138 = vmatmul.bf16.gmra.mxu0 %v891
      %v1139 = vpop.f32.mrf.mxu0
      %v1140 = vadd.f32 %v918, %v1139
      %v1141 = vpop.f32.mrf.mxu0
      %v1142 = vadd.f32 %v918, %v1141
      %1143 = vmatmul.bf16.gmra.mxu0 %v892
      %v1144 = vpop.f32.mrf.mxu0
      %v1145 = vadd.f32 %v918, %v1144
      %v1146 = vpop.f32.mrf.mxu0
      %v1147 = vadd.f32 %v918, %v1146
      %1148 = vmatmul.bf16.gmra.mxu0 %v893
      %v1149 = vpop.f32.mrf.mxu0
      %v1150 = vadd.f32 %v918, %v1149
      %v1151 = vpop.f32.mrf.mxu0
      %v1152 = vadd.f32 %v918, %v1151
      %1153 = vmatmul.bf16.gmra.mxu0 %v894
      %v1154 = vpop.f32.mrf.mxu0
      %v1155 = vadd.f32 %v918, %v1154
      %v1156 = vpop.f32.mrf.mxu0
      %v1157 = vadd.f32 %v918, %v1156
      %1158 = vmatmul.bf16.gmra.mxu0 %v895
      %v1159 = vpop.f32.mrf.mxu0
      %v1160 = vadd.f32 %v918, %v1159
      %v1161 = vpop.f32.mrf.mxu0
      %v1162 = vadd.f32 %v918, %v1161
      %1163 = vmatmul.bf16.gmra.mxu0 %v896
      %v1164 = vpop.f32.mrf.mxu0
      %v1165 = vadd.f32 %v918, %v1164
      %v1166 = vpop.f32.mrf.mxu0
      %v1167 = vadd.f32 %v918, %v1166
      %1168 = vmatmul.bf16.gmra.mxu0 %v897
      %v1169 = vpop.f32.mrf.mxu0
      %v1170 = vadd.f32 %v918, %v1169
      %v1171 = vpop.f32.mrf.mxu0
      %v1172 = vadd.f32 %v918, %v1171
      %1173 = vmatmul.bf16.gmra.mxu0 %v898
      %v1174 = vpop.f32.mrf.mxu0
      %v1175 = vadd.f32 %v918, %v1174
      %v1176 = vpop.f32.mrf.mxu0
      %v1177 = vadd.f32 %v918, %v1176
      %1178 = vdwg.mxu0
      %v1179 = vmul.f32 %v1100, 0.5
      %v1180 = vmul.f32 %v1102, 0.5
      %v1181 = vmul.f32 %v1105, 0.5
      %v1182 = vmul.f32 %v1107, 0.5
      %v1183 = vmul.f32 %v1110, 0.5
      %v1184 = vmul.f32 %v1112, 0.5
      %v1185 = vmul.f32 %v1115, 0.5
      %v1186 = vmul.f32 %v1117, 0.5
      %v1187 = vmul.f32 %v1120, 0.5
      %v1188 = vmul.f32 %v1122, 0.5
      %v1189 = vmul.f32 %v1125, 0.5
      %v1190 = vmul.f32 %v1127, 0.5
      %v1191 = vmul.f32 %v1130, 0.5
      %v1192 = vmul.f32 %v1132, 0.5
      %v1193 = vmul.f32 %v1135, 0.5
      %v1194 = vmul.f32 %v1137, 0.5
      %v1195 = vmul.f32 %v1140, 0.5
      %v1196 = vmul.f32 %v1142, 0.5
      %v1197 = vmul.f32 %v1145, 0.5
      %v1198 = vmul.f32 %v1147, 0.5
      %v1199 = vmul.f32 %v1150, 0.5
      %v1200 = vmul.f32 %v1152, 0.5
      %v1201 = vmul.f32 %v1155, 0.5
      %v1202 = vmul.f32 %v1157, 0.5
      %v1203 = vmul.f32 %v1160, 0.5
      %v1204 = vmul.f32 %v1162, 0.5
      %v1205 = vmul.f32 %v1165, 0.5
      %v1206 = vmul.f32 %v1167, 0.5
      %v1207 = vmul.f32 %v1170, 0.5
      %v1208 = vmul.f32 %v1172, 0.5
      %v1209 = vmul.f32 %v1175, 0.5
      %v1210 = vmul.f32 %v1177, 0.5
      %v1211 = vmul.f32 %v1179, 1.442695
      %v1212 = vpow.pop %v1211
      %v1213 = vmul.f32 %v1180, 1.442695
      %v1214 = vpow.pop %v1213
      %v1215 = vmul.f32 %v1181, 1.442695
      %v1216 = vpow.pop %v1215
      %v1217 = vmul.f32 %v1182, 1.442695
      %v1218 = vpow.pop %v1217
      %v1219 = vmul.f32 %v1183, 1.442695
      %v1220 = vpow.pop %v1219
      %v1221 = vmul.f32 %v1184, 1.442695
      %v1222 = vpow.pop %v1221
      %v1223 = vmul.f32 %v1185, 1.442695
      %v1224 = vpow.pop %v1223
      %v1225 = vmul.f32 %v1186, 1.442695
      %v1226 = vpow.pop %v1225
      %v1227 = vmul.f32 %v1187, 1.442695
      %v1228 = vpow.pop %v1227
      %v1229 = vmul.f32 %v1188, 1.442695
      %v1230 = vpow.pop %v1229
      %v1231 = vmul.f32 %v1189, 1.442695
      %v1232 = vpow.pop %v1231
      %v1233 = vmul.f32 %v1190, 1.442695
      %v1234 = vpow.pop %v1233
      %v1235 = vmul.f32 %v1191, 1.442695
      %v1236 = vpow.pop %v1235
      %v1237 = vmul.f32 %v1192, 1.442695
      %v1238 = vpow.pop %v1237
      %v1239 = vmul.f32 %v1193, 1.442695
      %v1240 = vpow.pop %v1239
      %v1241 = vmul.f32 %v1194, 1.442695
      %v1242 = vpow.pop %v1241
      %v1243 = vmul.f32 %v1195, 1.442695
      %v1244 = vpow.pop %v1243
      %v1245 = vmul.f32 %v1196, 1.442695
      %v1246 = vpow.pop %v1245
      %v1247 = vmul.f32 %v1197, 1.442695
      %v1248 = vpow.pop %v1247
      %v1249 = vmul.f32 %v1198, 1.442695
      %v1250 = vpow.pop %v1249
      %v1251 = vmul.f32 %v1199, 1.442695
      %v1252 = vpow.pop %v1251
      %v1253 = vmul.f32 %v1200, 1.442695
      %v1254 = vpow.pop %v1253
      %v1255 = vmul.f32 %v1201, 1.442695
      %v1256 = vpow.pop %v1255
      %v1257 = vmul.f32 %v1202, 1.442695
      %v1258 = vpow.pop %v1257
      %v1259 = vmul.f32 %v1203, 1.442695
      %v1260 = vpow.pop %v1259
      %v1261 = vmul.f32 %v1204, 1.442695
      %v1262 = vpow.pop %v1261
      %v1263 = vmul.f32 %v1205, 1.442695
      %v1264 = vpow.pop %v1263
      %v1265 = vmul.f32 %v1206, 1.442695
      %v1266 = vpow.pop %v1265
      %v1267 = vmul.f32 %v1207, 1.442695
      %v1268 = vpow.pop %v1267
      %v1269 = vmul.f32 %v1208, 1.442695
      %v1270 = vpow.pop %v1269
      %v1271 = vmul.f32 %v1209, 1.442695
      %v1272 = vpow.pop %v1271
      %v1273 = vmul.f32 %v1210, 1.442695
      %v1274 = vpow.pop %v1273
      %v1275 = vld [vmem:[%s432] sm:$0xff]
      %v1276 = vld [vmem:[%s432 + $0x8] sm:$0xff]
      %v1277 = vld [vmem:[%s432 + $0x10] sm:$0xff]
      %v1278 = vld [vmem:[%s432 + $0x18] sm:$0xff]
      %v1279 = vld [vmem:[%s432 + $0x20] sm:$0xff]
      %v1280 = vld [vmem:[%s432 + $0x28] sm:$0xff]
      %v1281 = vld [vmem:[%s432 + $0x30] sm:$0xff]
      %v1282 = vld [vmem:[%s432 + $0x38] sm:$0xff]
      %v1283 = vld [vmem:[%s432 + $0x40] sm:$0xff]
      %v1284 = vld [vmem:[%s432 + $0x48] sm:$0xff]
      %v1285 = vld [vmem:[%s432 + $0x50] sm:$0xff]
      %v1286 = vld [vmem:[%s432 + $0x58] sm:$0xff]
      %v1287 = vld [vmem:[%s432 + $0x60] sm:$0xff]
      %v1288 = vld [vmem:[%s432 + $0x68] sm:$0xff]
      %v1289 = vld [vmem:[%s432 + $0x70] sm:$0xff]
      %v1290 = vld [vmem:[%s432 + $0x78] sm:$0xff]
      %v1291 = vld [vmem:[%s432 + $0x80] sm:$0xff]
      %v1292 = vld [vmem:[%s432 + $0x88] sm:$0xff]
      %v1293 = vld [vmem:[%s432 + $0x90] sm:$0xff]
      %v1294 = vld [vmem:[%s432 + $0x98] sm:$0xff]
      %v1295 = vld [vmem:[%s432 + $0xa0] sm:$0xff]
      %v1296 = vld [vmem:[%s432 + $0xa8] sm:$0xff]
      %v1297 = vld [vmem:[%s432 + $0xb0] sm:$0xff]
      %v1298 = vld [vmem:[%s432 + $0xb8] sm:$0xff]
      %v1299 = vld [vmem:[%s432 + $0xc0] sm:$0xff]
      %v1300 = vld [vmem:[%s432 + $0xc8] sm:$0xff]
      %v1301 = vld [vmem:[%s432 + $0xd0] sm:$0xff]
      %v1302 = vld [vmem:[%s432 + $0xd8] sm:$0xff]
      %v1303 = vld [vmem:[%s432 + $0xe0] sm:$0xff]
      %v1304 = vld [vmem:[%s432 + $0xe8] sm:$0xff]
      %v1305 = vld [vmem:[%s432 + $0xf0] sm:$0xff]
      %v1306 = vld [vmem:[%s432 + $0xf8] sm:$0xff]
      %v1307 = vmul.f32 %v1275, %v1212
      %v1308 = vmul.f32 %v1276, %v1214
      %v1309 = vmul.f32 %v1277, %v1216
      %v1310 = vmul.f32 %v1278, %v1218
      %v1311 = vmul.f32 %v1279, %v1220
      %v1312 = vmul.f32 %v1280, %v1222
      %v1313 = vmul.f32 %v1281, %v1224
      %v1314 = vmul.f32 %v1282, %v1226
      %v1315 = vmul.f32 %v1283, %v1228
      %v1316 = vmul.f32 %v1284, %v1230
      %v1317 = vmul.f32 %v1285, %v1232
      %v1318 = vmul.f32 %v1286, %v1234
      %v1319 = vmul.f32 %v1287, %v1236
      %v1320 = vmul.f32 %v1288, %v1238
      %v1321 = vmul.f32 %v1289, %v1240
      %v1322 = vmul.f32 %v1290, %v1242
      %v1323 = vmul.f32 %v1291, %v1244
      %v1324 = vmul.f32 %v1292, %v1246
      %v1325 = vmul.f32 %v1293, %v1248
      %v1326 = vmul.f32 %v1294, %v1250
      %v1327 = vmul.f32 %v1295, %v1252
      %v1328 = vmul.f32 %v1296, %v1254
      %v1329 = vmul.f32 %v1297, %v1256
      %v1330 = vmul.f32 %v1298, %v1258
      %v1331 = vmul.f32 %v1299, %v1260
      %v1332 = vmul.f32 %v1300, %v1262
      %v1333 = vmul.f32 %v1301, %v1264
      %v1334 = vmul.f32 %v1302, %v1266
      %v1335 = vmul.f32 %v1303, %v1268
      %v1336 = vmul.f32 %v1304, %v1270
      %v1337 = vmul.f32 %v1305, %v1272
      %v1338 = vmul.f32 %v1306, %v1274
      %v1339 = vadd.f32 %v1307, %v1011
      %v1340 = vadd.f32 %v1308, %v1013
      %v1341 = vadd.f32 %v1309, %v1016
      %v1342 = vadd.f32 %v1310, %v1018
      %v1343 = vadd.f32 %v1311, %v1021
      %v1344 = vadd.f32 %v1312, %v1023
      %v1345 = vadd.f32 %v1313, %v1026
      %v1346 = vadd.f32 %v1314, %v1028
      %v1347 = vadd.f32 %v1315, %v1031
      %v1348 = vadd.f32 %v1316, %v1033
      %v1349 = vadd.f32 %v1317, %v1036
      %v1350 = vadd.f32 %v1318, %v1038
      %v1351 = vadd.f32 %v1319, %v1041
      %v1352 = vadd.f32 %v1320, %v1043
      %v1353 = vadd.f32 %v1321, %v1046
      %v1354 = vadd.f32 %v1322, %v1048
      %v1355 = vadd.f32 %v1323, %v1051
      %v1356 = vadd.f32 %v1324, %v1053
      %v1357 = vadd.f32 %v1325, %v1056
      %v1358 = vadd.f32 %v1326, %v1058
      %v1359 = vadd.f32 %v1327, %v1061
      %v1360 = vadd.f32 %v1328, %v1063
      %v1361 = vadd.f32 %v1329, %v1066
      %v1362 = vadd.f32 %v1330, %v1068
      %v1363 = vadd.f32 %v1331, %v1071
      %v1364 = vadd.f32 %v1332, %v1073
      %v1365 = vadd.f32 %v1333, %v1076
      %v1366 = vadd.f32 %v1334, %v1078
      %v1367 = vadd.f32 %v1335, %v1081
      %v1368 = vadd.f32 %v1336, %v1083
      %v1369 = vadd.f32 %v1337, %v1086
      %v1370 = vadd.f32 %v1338, %v1088
      %v1371 = vpack.c.bf16 %v1340, %v1339
      %v1372 = vpack.c.bf16 %v1342, %v1341
      %v1373 = vpack.c.bf16 %v1344, %v1343
      %v1374 = vpack.c.bf16 %v1346, %v1345
      %v1375 = vpack.c.bf16 %v1348, %v1347
      %v1376 = vpack.c.bf16 %v1350, %v1349
      %v1377 = vpack.c.bf16 %v1352, %v1351
      %v1378 = vpack.c.bf16 %v1354, %v1353
      %v1379 = vpack.c.bf16 %v1356, %v1355
      %v1380 = vpack.c.bf16 %v1358, %v1357
      %v1381 = vpack.c.bf16 %v1360, %v1359
      %v1382 = vpack.c.bf16 %v1362, %v1361
      %v1383 = vpack.c.bf16 %v1364, %v1363
      %v1384 = vpack.c.bf16 %v1366, %v1365
      %v1385 = vpack.c.bf16 %v1368, %v1367
      %v1386 = vpack.c.bf16 %v1370, %v1369
      %v1387 = vld [vmem:[%s8] sm:$0xf]
      %v1388 = vld [vmem:[%s8 + $0x4] sm:$0xf]
      %v1389 = vld [vmem:[%s8 + $0x8] sm:$0xf]
      %v1390 = vld [vmem:[%s8 + $0xc] sm:$0xf]
      %v1391 = vld [vmem:[%s8 + $0x10] sm:$0xf]
      %v1392 = vld [vmem:[%s8 + $0x14] sm:$0xf]
      %v1393 = vld [vmem:[%s8 + $0x18] sm:$0xf]
      %v1394 = vld [vmem:[%s8 + $0x1c] sm:$0xf]
      %v1395 = vld [vmem:[%s8 + $0x20] sm:$0xf]
      %v1396 = vld [vmem:[%s8 + $0x24] sm:$0xf]
      %v1397 = vld [vmem:[%s8 + $0x28] sm:$0xf]
      %v1398 = vld [vmem:[%s8 + $0x2c] sm:$0xf]
      %v1399 = vld [vmem:[%s8 + $0x30] sm:$0xf]
      %v1400 = vld [vmem:[%s8 + $0x34] sm:$0xf]
      %v1401 = vld [vmem:[%s8 + $0x38] sm:$0xf]
      %v1402 = vld [vmem:[%s8 + $0x3c] sm:$0xf]
      %v1403 = vld [vmem:[%s9] sm:$0x1]
      %v1405 = vperm.slane %v1403, 0
      %v1423 = vunpack.c.l.b16 %v1387
      %v1424 = vunpack.c.l.b16 %v1388
      %v1425 = vunpack.c.l.b16 %v1389
      %v1426 = vunpack.c.l.b16 %v1390
      %v1427 = vunpack.c.l.b16 %v1391
      %v1428 = vunpack.c.l.b16 %v1392
      %v1429 = vunpack.c.l.b16 %v1393
      %v1430 = vunpack.c.l.b16 %v1394
      %v1431 = vunpack.c.l.b16 %v1395
      %v1432 = vunpack.c.l.b16 %v1396
      %v1433 = vunpack.c.l.b16 %v1397
      %v1434 = vunpack.c.l.b16 %v1398
      %v1435 = vunpack.c.l.b16 %v1399
      %v1436 = vunpack.c.l.b16 %v1400
      %v1437 = vunpack.c.l.b16 %v1401
      %v1438 = vunpack.c.l.b16 %v1402
      %v1439 = vpack.c.b16 %v1424, %v1423
      %v1440 = vpack.c.b16 %v1426, %v1425
      %v1441 = vpack.c.b16 %v1428, %v1427
      %v1442 = vpack.c.b16 %v1430, %v1429
      %v1443 = vpack.c.b16 %v1432, %v1431
      %v1444 = vpack.c.b16 %v1434, %v1433
      %v1445 = vpack.c.b16 %v1436, %v1435
      %v1446 = vpack.c.b16 %v1438, %v1437
      %1455 = vmatpush.bf16.msra.mxu0 %v1446
      %1456 = vmatpush.bf16.msra.mxu0 %v1445
      %1457 = vmatpush.bf16.msra.mxu0 %v1444
      %1458 = vmatpush.bf16.msra.mxu0 %v1443
      %1459 = vmatpush.bf16.msra.mxu0 %v1442
      %1460 = vmatpush.bf16.msra.mxu0 %v1441
      %1461 = vmatpush.bf16.msra.mxu0 %v1440
      %1462 = vmatpush.bf16.msra.mxu0 %v1439
      %1463 = vmatmul.bf16.gmra.mxu0 %v1371
      %v1464 = vpop.f32.mrf.mxu0
      %v1465 = vadd.f32 %v1405, %v1464
      %v1466 = vpop.f32.mrf.mxu0
      %v1467 = vadd.f32 %v1405, %v1466
      %1468 = vmatmul.bf16.gmra.mxu0 %v1372
      %v1469 = vpop.f32.mrf.mxu0
      %v1470 = vadd.f32 %v1405, %v1469
      %v1471 = vpop.f32.mrf.mxu0
      %v1472 = vadd.f32 %v1405, %v1471
      %1473 = vmatmul.bf16.gmra.mxu0 %v1373
      %v1474 = vpop.f32.mrf.mxu0
      %v1475 = vadd.f32 %v1405, %v1474
      %v1476 = vpop.f32.mrf.mxu0
      %v1477 = vadd.f32 %v1405, %v1476
      %1478 = vmatmul.bf16.gmra.mxu0 %v1374
      %v1479 = vpop.f32.mrf.mxu0
      %v1480 = vadd.f32 %v1405, %v1479
      %v1481 = vpop.f32.mrf.mxu0
      %v1482 = vadd.f32 %v1405, %v1481
      %1483 = vmatmul.bf16.gmra.mxu0 %v1375
      %v1484 = vpop.f32.mrf.mxu0
      %v1485 = vadd.f32 %v1405, %v1484
      %v1486 = vpop.f32.mrf.mxu0
      %v1487 = vadd.f32 %v1405, %v1486
      %1488 = vmatmul.bf16.gmra.mxu0 %v1376
      %v1489 = vpop.f32.mrf.mxu0
      %v1490 = vadd.f32 %v1405, %v1489
      %v1491 = vpop.f32.mrf.mxu0
      %v1492 = vadd.f32 %v1405, %v1491
      %1493 = vmatmul.bf16.gmra.mxu0 %v1377
      %v1494 = vpop.f32.mrf.mxu0
      %v1495 = vadd.f32 %v1405, %v1494
      %v1496 = vpop.f32.mrf.mxu0
      %v1497 = vadd.f32 %v1405, %v1496
      %1498 = vmatmul.bf16.gmra.mxu0 %v1378
      %v1499 = vpop.f32.mrf.mxu0
      %v1500 = vadd.f32 %v1405, %v1499
      %v1501 = vpop.f32.mrf.mxu0
      %v1502 = vadd.f32 %v1405, %v1501
      %1503 = vmatmul.bf16.gmra.mxu0 %v1379
      %v1504 = vpop.f32.mrf.mxu0
      %v1505 = vadd.f32 %v1405, %v1504
      %v1506 = vpop.f32.mrf.mxu0
      %v1507 = vadd.f32 %v1405, %v1506
      %1508 = vmatmul.bf16.gmra.mxu0 %v1380
      %v1509 = vpop.f32.mrf.mxu0
      %v1510 = vadd.f32 %v1405, %v1509
      %v1511 = vpop.f32.mrf.mxu0
      %v1512 = vadd.f32 %v1405, %v1511
      %1513 = vmatmul.bf16.gmra.mxu0 %v1381
      %v1514 = vpop.f32.mrf.mxu0
      %v1515 = vadd.f32 %v1405, %v1514
      %v1516 = vpop.f32.mrf.mxu0
      %v1517 = vadd.f32 %v1405, %v1516
      %1518 = vmatmul.bf16.gmra.mxu0 %v1382
      %v1519 = vpop.f32.mrf.mxu0
      %v1520 = vadd.f32 %v1405, %v1519
      %v1521 = vpop.f32.mrf.mxu0
      %v1522 = vadd.f32 %v1405, %v1521
      %1523 = vmatmul.bf16.gmra.mxu0 %v1383
      %v1524 = vpop.f32.mrf.mxu0
      %v1525 = vadd.f32 %v1405, %v1524
      %v1526 = vpop.f32.mrf.mxu0
      %v1527 = vadd.f32 %v1405, %v1526
      %1528 = vmatmul.bf16.gmra.mxu0 %v1384
      %v1529 = vpop.f32.mrf.mxu0
      %v1530 = vadd.f32 %v1405, %v1529
      %v1531 = vpop.f32.mrf.mxu0
      %v1532 = vadd.f32 %v1405, %v1531
      %1533 = vmatmul.bf16.gmra.mxu0 %v1385
      %v1534 = vpop.f32.mrf.mxu0
      %v1535 = vadd.f32 %v1405, %v1534
      %v1536 = vpop.f32.mrf.mxu0
      %v1537 = vadd.f32 %v1405, %v1536
      %1538 = vmatmul.bf16.gmra.mxu0 %v1386
      %v1539 = vpop.f32.mrf.mxu0
      %v1540 = vadd.f32 %v1405, %v1539
      %v1541 = vpop.f32.mrf.mxu0
      %v1542 = vadd.f32 %v1405, %v1541
      %1543 = vdwg.mxu0
      %v1544 = vtanh.pop %v1465
      %v1545 = vtanh.pop %v1467
      %v1546 = vtanh.pop %v1470
      %v1547 = vtanh.pop %v1472
      %v1548 = vtanh.pop %v1475
      %v1549 = vtanh.pop %v1477
      %v1550 = vtanh.pop %v1480
      %v1551 = vtanh.pop %v1482
      %v1552 = vtanh.pop %v1485
      %v1553 = vtanh.pop %v1487
      %v1554 = vtanh.pop %v1490
      %v1555 = vtanh.pop %v1492
      %v1556 = vtanh.pop %v1495
      %v1557 = vtanh.pop %v1497
      %v1558 = vtanh.pop %v1500
      %v1559 = vtanh.pop %v1502
      %v1560 = vtanh.pop %v1505
      %v1561 = vtanh.pop %v1507
      %v1562 = vtanh.pop %v1510
      %v1563 = vtanh.pop %v1512
      %v1564 = vtanh.pop %v1515
      %v1565 = vtanh.pop %v1517
      %v1566 = vtanh.pop %v1520
      %v1567 = vtanh.pop %v1522
      %v1568 = vtanh.pop %v1525
      %v1569 = vtanh.pop %v1527
      %v1570 = vtanh.pop %v1530
      %v1571 = vtanh.pop %v1532
      %v1572 = vtanh.pop %v1535
      %v1573 = vtanh.pop %v1537
      %v1574 = vtanh.pop %v1540
      %v1575 = vtanh.pop %v1542
      %v1576 = vpack.c.bf16 %v1545, %v1544
      %v1577 = vpack.c.bf16 %v1547, %v1546
      %v1578 = vpack.c.bf16 %v1549, %v1548
      %v1579 = vpack.c.bf16 %v1551, %v1550
      %v1580 = vpack.c.bf16 %v1553, %v1552
      %v1581 = vpack.c.bf16 %v1555, %v1554
      %v1582 = vpack.c.bf16 %v1557, %v1556
      %v1583 = vpack.c.bf16 %v1559, %v1558
      %v1584 = vpack.c.bf16 %v1561, %v1560
      %v1585 = vpack.c.bf16 %v1563, %v1562
      %v1586 = vpack.c.bf16 %v1565, %v1564
      %v1587 = vpack.c.bf16 %v1567, %v1566
      %v1588 = vpack.c.bf16 %v1569, %v1568
      %v1589 = vpack.c.bf16 %v1571, %v1570
      %v1590 = vpack.c.bf16 %v1573, %v1572
      %v1591 = vpack.c.bf16 %v1575, %v1574
      %v1592 = vld [vmem:[%s10] sm:$0xf]
      %v1593 = vld [vmem:[%s10 + $0x4] sm:$0xf]
      %v1594 = vld [vmem:[%s10 + $0x8] sm:$0xf]
      %v1595 = vld [vmem:[%s10 + $0xc] sm:$0xf]
      %v1596 = vld [vmem:[%s10 + $0x10] sm:$0xf]
      %v1597 = vld [vmem:[%s10 + $0x14] sm:$0xf]
      %v1598 = vld [vmem:[%s10 + $0x18] sm:$0xf]
      %v1599 = vld [vmem:[%s10 + $0x1c] sm:$0xf]
      %v1600 = vld [vmem:[%s10 + $0x20] sm:$0xf]
      %v1601 = vld [vmem:[%s10 + $0x24] sm:$0xf]
      %v1602 = vld [vmem:[%s10 + $0x28] sm:$0xf]
      %v1603 = vld [vmem:[%s10 + $0x2c] sm:$0xf]
      %v1604 = vld [vmem:[%s10 + $0x30] sm:$0xf]
      %v1605 = vld [vmem:[%s10 + $0x34] sm:$0xf]
      %v1606 = vld [vmem:[%s10 + $0x38] sm:$0xf]
      %v1607 = vld [vmem:[%s10 + $0x3c] sm:$0xf]
      %v1608 = vld [vmem:[%s11] sm:$0x1]
      %v1610 = vperm.slane %v1608, 0
      %v1628 = vunpack.c.l.b16 %v1592
      %v1629 = vunpack.c.l.b16 %v1593
      %v1630 = vunpack.c.l.b16 %v1594
      %v1631 = vunpack.c.l.b16 %v1595
      %v1632 = vunpack.c.l.b16 %v1596
      %v1633 = vunpack.c.l.b16 %v1597
      %v1634 = vunpack.c.l.b16 %v1598
      %v1635 = vunpack.c.l.b16 %v1599
      %v1636 = vunpack.c.l.b16 %v1600
      %v1637 = vunpack.c.l.b16 %v1601
      %v1638 = vunpack.c.l.b16 %v1602
      %v1639 = vunpack.c.l.b16 %v1603
      %v1640 = vunpack.c.l.b16 %v1604
      %v1641 = vunpack.c.l.b16 %v1605
      %v1642 = vunpack.c.l.b16 %v1606
      %v1643 = vunpack.c.l.b16 %v1607
      %v1644 = vpack.c.b16 %v1629, %v1628
      %v1645 = vpack.c.b16 %v1631, %v1630
      %v1646 = vpack.c.b16 %v1633, %v1632
      %v1647 = vpack.c.b16 %v1635, %v1634
      %v1648 = vpack.c.b16 %v1637, %v1636
      %v1649 = vpack.c.b16 %v1639, %v1638
      %v1650 = vpack.c.b16 %v1641, %v1640
      %v1651 = vpack.c.b16 %v1643, %v1642
      %1660 = vmatpush.bf16.msra.mxu0 %v1651
      %1661 = vmatpush.bf16.msra.mxu0 %v1650
      %1662 = vmatpush.bf16.msra.mxu0 %v1649
      %1663 = vmatpush.bf16.msra.mxu0 %v1648
      %1664 = vmatpush.bf16.msra.mxu0 %v1647
      %1665 = vmatpush.bf16.msra.mxu0 %v1646
      %1666 = vmatpush.bf16.msra.mxu0 %v1645
      %1667 = vmatpush.bf16.msra.mxu0 %v1644
      %1668 = vmatmul.bf16.gmra.mxu0 %v1576
      %v1669 = vpop.f32.mrf.mxu0
      %v1670 = vadd.f32 %v1610, %v1669
      %v1671 = vpop.f32.mrf.mxu0
      %v1672 = vadd.f32 %v1610, %v1671
      %1673 = vmatmul.bf16.gmra.mxu0 %v1577
      %v1674 = vpop.f32.mrf.mxu0
      %v1675 = vadd.f32 %v1610, %v1674
      %v1676 = vpop.f32.mrf.mxu0
      %v1677 = vadd.f32 %v1610, %v1676
      %1678 = vmatmul.bf16.gmra.mxu0 %v1578
      %v1679 = vpop.f32.mrf.mxu0
      %v1680 = vadd.f32 %v1610, %v1679
      %v1681 = vpop.f32.mrf.mxu0
      %v1682 = vadd.f32 %v1610, %v1681
      %1683 = vmatmul.bf16.gmra.mxu0 %v1579
      %v1684 = vpop.f32.mrf.mxu0
      %v1685 = vadd.f32 %v1610, %v1684
      %v1686 = vpop.f32.mrf.mxu0
      %v1687 = vadd.f32 %v1610, %v1686
      %1688 = vmatmul.bf16.gmra.mxu0 %v1580
      %v1689 = vpop.f32.mrf.mxu0
      %v1690 = vadd.f32 %v1610, %v1689
      %v1691 = vpop.f32.mrf.mxu0
      %v1692 = vadd.f32 %v1610, %v1691
      %1693 = vmatmul.bf16.gmra.mxu0 %v1581
      %v1694 = vpop.f32.mrf.mxu0
      %v1695 = vadd.f32 %v1610, %v1694
      %v1696 = vpop.f32.mrf.mxu0
      %v1697 = vadd.f32 %v1610, %v1696
      %1698 = vmatmul.bf16.gmra.mxu0 %v1582
      %v1699 = vpop.f32.mrf.mxu0
      %v1700 = vadd.f32 %v1610, %v1699
      %v1701 = vpop.f32.mrf.mxu0
      %v1702 = vadd.f32 %v1610, %v1701
      %1703 = vmatmul.bf16.gmra.mxu0 %v1583
      %v1704 = vpop.f32.mrf.mxu0
      %v1705 = vadd.f32 %v1610, %v1704
      %v1706 = vpop.f32.mrf.mxu0
      %v1707 = vadd.f32 %v1610, %v1706
      %1708 = vmatmul.bf16.gmra.mxu0 %v1584
      %v1709 = vpop.f32.mrf.mxu0
      %v1710 = vadd.f32 %v1610, %v1709
      %v1711 = vpop.f32.mrf.mxu0
      %v1712 = vadd.f32 %v1610, %v1711
      %1713 = vmatmul.bf16.gmra.mxu0 %v1585
      %v1714 = vpop.f32.mrf.mxu0
      %v1715 = vadd.f32 %v1610, %v1714
      %v1716 = vpop.f32.mrf.mxu0
      %v1717 = vadd.f32 %v1610, %v1716
      %1718 = vmatmul.bf16.gmra.mxu0 %v1586
      %v1719 = vpop.f32.mrf.mxu0
      %v1720 = vadd.f32 %v1610, %v1719
      %v1721 = vpop.f32.mrf.mxu0
      %v1722 = vadd.f32 %v1610, %v1721
      %1723 = vmatmul.bf16.gmra.mxu0 %v1587
      %v1724 = vpop.f32.mrf.mxu0
      %v1725 = vadd.f32 %v1610, %v1724
      %v1726 = vpop.f32.mrf.mxu0
      %v1727 = vadd.f32 %v1610, %v1726
      %1728 = vmatmul.bf16.gmra.mxu0 %v1588
      %v1729 = vpop.f32.mrf.mxu0
      %v1730 = vadd.f32 %v1610, %v1729
      %v1731 = vpop.f32.mrf.mxu0
      %v1732 = vadd.f32 %v1610, %v1731
      %1733 = vmatmul.bf16.gmra.mxu0 %v1589
      %v1734 = vpop.f32.mrf.mxu0
      %v1735 = vadd.f32 %v1610, %v1734
      %v1736 = vpop.f32.mrf.mxu0
      %v1737 = vadd.f32 %v1610, %v1736
      %1738 = vmatmul.bf16.gmra.mxu0 %v1590
      %v1739 = vpop.f32.mrf.mxu0
      %v1740 = vadd.f32 %v1610, %v1739
      %v1741 = vpop.f32.mrf.mxu0
      %v1742 = vadd.f32 %v1610, %v1741
      %1743 = vmatmul.bf16.gmra.mxu0 %v1591
      %v1744 = vpop.f32.mrf.mxu0
      %v1745 = vadd.f32 %v1610, %v1744
      %v1746 = vpop.f32.mrf.mxu0
      %v1747 = vadd.f32 %v1610, %v1746
      %1748 = vdwg.mxu0
      %v1749 = vxor.u32 %v1670, 2147483648
      %v1750 = vxor.u32 %v1672, 2147483648
      %v1751 = vxor.u32 %v1675, 2147483648
      %v1752 = vxor.u32 %v1677, 2147483648
      %v1753 = vxor.u32 %v1680, 2147483648
      %v1754 = vxor.u32 %v1682, 2147483648
      %v1755 = vxor.u32 %v1685, 2147483648
      %v1756 = vxor.u32 %v1687, 2147483648
      %v1757 = vxor.u32 %v1690, 2147483648
      %v1758 = vxor.u32 %v1692, 2147483648
      %v1759 = vxor.u32 %v1695, 2147483648
      %v1760 = vxor.u32 %v1697, 2147483648
      %v1761 = vxor.u32 %v1700, 2147483648
      %v1762 = vxor.u32 %v1702, 2147483648
      %v1763 = vxor.u32 %v1705, 2147483648
      %v1764 = vxor.u32 %v1707, 2147483648
      %v1765 = vxor.u32 %v1710, 2147483648
      %v1766 = vxor.u32 %v1712, 2147483648
      %v1767 = vxor.u32 %v1715, 2147483648
      %v1768 = vxor.u32 %v1717, 2147483648
      %v1769 = vxor.u32 %v1720, 2147483648
      %v1770 = vxor.u32 %v1722, 2147483648
      %v1771 = vxor.u32 %v1725, 2147483648
      %v1772 = vxor.u32 %v1727, 2147483648
      %v1773 = vxor.u32 %v1730, 2147483648
      %v1774 = vxor.u32 %v1732, 2147483648
      %v1775 = vxor.u32 %v1735, 2147483648
      %v1776 = vxor.u32 %v1737, 2147483648
      %v1777 = vxor.u32 %v1740, 2147483648
      %v1778 = vxor.u32 %v1742, 2147483648
      %v1779 = vxor.u32 %v1745, 2147483648
      %v1780 = vxor.u32 %v1747, 2147483648
      %v1781 = vmul.f32 %v1749, 1.442695
      %v1782 = vpow.pop %v1781
      %v1783 = vmul.f32 %v1750, 1.442695
      %v1784 = vpow.pop %v1783
      %v1785 = vmul.f32 %v1751, 1.442695
      %v1786 = vpow.pop %v1785
      %v1787 = vmul.f32 %v1752, 1.442695
      %v1788 = vpow.pop %v1787
      %v1789 = vmul.f32 %v1753, 1.442695
      %v1790 = vpow.pop %v1789
      %v1791 = vmul.f32 %v1754, 1.442695
      %v1792 = vpow.pop %v1791
      %v1793 = vmul.f32 %v1755, 1.442695
      %v1794 = vpow.pop %v1793
      %v1795 = vmul.f32 %v1756, 1.442695
      %v1796 = vpow.pop %v1795
      %v1797 = vmul.f32 %v1757, 1.442695
      %v1798 = vpow.pop %v1797
      %v1799 = vmul.f32 %v1758, 1.442695
      %v1800 = vpow.pop %v1799
      %v1801 = vmul.f32 %v1759, 1.442695
      %v1802 = vpow.pop %v1801
      %v1803 = vmul.f32 %v1760, 1.442695
      %v1804 = vpow.pop %v1803
      %v1805 = vmul.f32 %v1761, 1.442695
      %v1806 = vpow.pop %v1805
      %v1807 = vmul.f32 %v1762, 1.442695
      %v1808 = vpow.pop %v1807
      %v1809 = vmul.f32 %v1763, 1.442695
      %v1810 = vpow.pop %v1809
      %v1811 = vmul.f32 %v1764, 1.442695
      %v1812 = vpow.pop %v1811
      %v1813 = vmul.f32 %v1765, 1.442695
      %v1814 = vpow.pop %v1813
      %v1815 = vmul.f32 %v1766, 1.442695
      %v1816 = vpow.pop %v1815
      %v1817 = vmul.f32 %v1767, 1.442695
      %v1818 = vpow.pop %v1817
      %v1819 = vmul.f32 %v1768, 1.442695
      %v1820 = vpow.pop %v1819
      %v1821 = vmul.f32 %v1769, 1.442695
      %v1822 = vpow.pop %v1821
      %v1823 = vmul.f32 %v1770, 1.442695
      %v1824 = vpow.pop %v1823
      %v1825 = vmul.f32 %v1771, 1.442695
      %v1826 = vpow.pop %v1825
      %v1827 = vmul.f32 %v1772, 1.442695
      %v1828 = vpow.pop %v1827
      %v1829 = vmul.f32 %v1773, 1.442695
      %v1830 = vpow.pop %v1829
      %v1831 = vmul.f32 %v1774, 1.442695
      %v1832 = vpow.pop %v1831
      %v1833 = vmul.f32 %v1775, 1.442695
      %v1834 = vpow.pop %v1833
      %v1835 = vmul.f32 %v1776, 1.442695
      %v1836 = vpow.pop %v1835
      %v1837 = vmul.f32 %v1777, 1.442695
      %v1838 = vpow.pop %v1837
      %v1839 = vmul.f32 %v1778, 1.442695
      %v1840 = vpow.pop %v1839
      %v1841 = vmul.f32 %v1779, 1.442695
      %v1842 = vpow.pop %v1841
      %v1843 = vmul.f32 %v1780, 1.442695
      %v1844 = vpow.pop %v1843
      %v1845 = vadd.f32 %v1782, 1.0
      %v1846 = vadd.f32 %v1784, 1.0
      %v1847 = vadd.f32 %v1786, 1.0
      %v1848 = vadd.f32 %v1788, 1.0
      %v1849 = vadd.f32 %v1790, 1.0
      %v1850 = vadd.f32 %v1792, 1.0
      %v1851 = vadd.f32 %v1794, 1.0
      %v1852 = vadd.f32 %v1796, 1.0
      %v1853 = vadd.f32 %v1798, 1.0
      %v1854 = vadd.f32 %v1800, 1.0
      %v1855 = vadd.f32 %v1802, 1.0
      %v1856 = vadd.f32 %v1804, 1.0
      %v1857 = vadd.f32 %v1806, 1.0
      %v1858 = vadd.f32 %v1808, 1.0
      %v1859 = vadd.f32 %v1810, 1.0
      %v1860 = vadd.f32 %v1812, 1.0
      %v1861 = vadd.f32 %v1814, 1.0
      %v1862 = vadd.f32 %v1816, 1.0
      %v1863 = vadd.f32 %v1818, 1.0
      %v1864 = vadd.f32 %v1820, 1.0
      %v1865 = vadd.f32 %v1822, 1.0
      %v1866 = vadd.f32 %v1824, 1.0
      %v1867 = vadd.f32 %v1826, 1.0
      %v1868 = vadd.f32 %v1828, 1.0
      %v1869 = vadd.f32 %v1830, 1.0
      %v1870 = vadd.f32 %v1832, 1.0
      %v1871 = vadd.f32 %v1834, 1.0
      %v1872 = vadd.f32 %v1836, 1.0
      %v1873 = vadd.f32 %v1838, 1.0
      %v1874 = vadd.f32 %v1840, 1.0
      %v1875 = vadd.f32 %v1842, 1.0
      %v1876 = vadd.f32 %v1844, 1.0
      %v1877 = vrcp.pop %v1845
      %v1878 = vmul.f32 %v1845, %v1877
      %v1879 = vsub.f32 1.0, %v1878
      %v1880 = vmul.f32 %v1877, %v1879
      %v1881 = vadd.f32 %v1877, %v1880
      %vm1882 = vweird.f32 %v1845
      %vm1883 = vweird.f32 %v1877
      %vm1884 = vmor %vm1882, %vm1883
      %v1885 = vsel %vm1884, %v1877, %v1881
      %v1886 = vand.u32 2147483647, %v1845
      %vm1887 = vcmp.eq.f32.partialorder %v1886, 8.507059e+37
      %v1888 = vand.u32 %v1845, 2147483648
      %v1889 = vor.u32 1.1754944e-38, %v1888
      %v1890 = vsel %vm1887, %v1889, %v1885
      %v1891 = vmul.f32 1.0, %v1890
      %v1892 = vrcp.pop %v1846
      %v1893 = vmul.f32 %v1846, %v1892
      %v1894 = vsub.f32 1.0, %v1893
      %v1895 = vmul.f32 %v1892, %v1894
      %v1896 = vadd.f32 %v1892, %v1895
      %vm1897 = vweird.f32 %v1846
      %vm1898 = vweird.f32 %v1892
      %vm1899 = vmor %vm1897, %vm1898
      %v1900 = vsel %vm1899, %v1892, %v1896
      %v1901 = vand.u32 2147483647, %v1846
      %vm1902 = vcmp.eq.f32.partialorder %v1901, 8.507059e+37
      %v1903 = vand.u32 %v1846, 2147483648
      %v1904 = vor.u32 1.1754944e-38, %v1903
      %v1905 = vsel %vm1902, %v1904, %v1900
      %v1906 = vmul.f32 1.0, %v1905
      %v1907 = vrcp.pop %v1847
      %v1908 = vmul.f32 %v1847, %v1907
      %v1909 = vsub.f32 1.0, %v1908
      %v1910 = vmul.f32 %v1907, %v1909
      %v1911 = vadd.f32 %v1907, %v1910
      %vm1912 = vweird.f32 %v1847
      %vm1913 = vweird.f32 %v1907
      %vm1914 = vmor %vm1912, %vm1913
      %v1915 = vsel %vm1914, %v1907, %v1911
      %v1916 = vand.u32 2147483647, %v1847
      %vm1917 = vcmp.eq.f32.partialorder %v1916, 8.507059e+37
      %v1918 = vand.u32 %v1847, 2147483648
      %v1919 = vor.u32 1.1754944e-38, %v1918
      %v1920 = vsel %vm1917, %v1919, %v1915
      %v1921 = vmul.f32 1.0, %v1920
      %v1922 = vrcp.pop %v1848
      %v1923 = vmul.f32 %v1848, %v1922
      %v1924 = vsub.f32 1.0, %v1923
      %v1925 = vmul.f32 %v1922, %v1924
      %v1926 = vadd.f32 %v1922, %v1925
      %vm1927 = vweird.f32 %v1848
      %vm1928 = vweird.f32 %v1922
      %vm1929 = vmor %vm1927, %vm1928
      %v1930 = vsel %vm1929, %v1922, %v1926
      %v1931 = vand.u32 2147483647, %v1848
      %vm1932 = vcmp.eq.f32.partialorder %v1931, 8.507059e+37
      %v1933 = vand.u32 %v1848, 2147483648
      %v1934 = vor.u32 1.1754944e-38, %v1933
      %v1935 = vsel %vm1932, %v1934, %v1930
      %v1936 = vmul.f32 1.0, %v1935
      %v1937 = vrcp.pop %v1849
      %v1938 = vmul.f32 %v1849, %v1937
      %v1939 = vsub.f32 1.0, %v1938
      %v1940 = vmul.f32 %v1937, %v1939
      %v1941 = vadd.f32 %v1937, %v1940
      %vm1942 = vweird.f32 %v1849
      %vm1943 = vweird.f32 %v1937
      %vm1944 = vmor %vm1942, %vm1943
      %v1945 = vsel %vm1944, %v1937, %v1941
      %v1946 = vand.u32 2147483647, %v1849
      %vm1947 = vcmp.eq.f32.partialorder %v1946, 8.507059e+37
      %v1948 = vand.u32 %v1849, 2147483648
      %v1949 = vor.u32 1.1754944e-38, %v1948
      %v1950 = vsel %vm1947, %v1949, %v1945
      %v1951 = vmul.f32 1.0, %v1950
      %v1952 = vrcp.pop %v1850
      %v1953 = vmul.f32 %v1850, %v1952
      %v1954 = vsub.f32 1.0, %v1953
      %v1955 = vmul.f32 %v1952, %v1954
      %v1956 = vadd.f32 %v1952, %v1955
      %vm1957 = vweird.f32 %v1850
      %vm1958 = vweird.f32 %v1952
      %vm1959 = vmor %vm1957, %vm1958
      %v1960 = vsel %vm1959, %v1952, %v1956
      %v1961 = vand.u32 2147483647, %v1850
      %vm1962 = vcmp.eq.f32.partialorder %v1961, 8.507059e+37
      %v1963 = vand.u32 %v1850, 2147483648
      %v1964 = vor.u32 1.1754944e-38, %v1963
      %v1965 = vsel %vm1962, %v1964, %v1960
      %v1966 = vmul.f32 1.0, %v1965
      %v1967 = vrcp.pop %v1851
      %v1968 = vmul.f32 %v1851, %v1967
      %v1969 = vsub.f32 1.0, %v1968
      %v1970 = vmul.f32 %v1967, %v1969
      %v1971 = vadd.f32 %v1967, %v1970
      %vm1972 = vweird.f32 %v1851
      %vm1973 = vweird.f32 %v1967
      %vm1974 = vmor %vm1972, %vm1973
      %v1975 = vsel %vm1974, %v1967, %v1971
      %v1976 = vand.u32 2147483647, %v1851
      %vm1977 = vcmp.eq.f32.partialorder %v1976, 8.507059e+37
      %v1978 = vand.u32 %v1851, 2147483648
      %v1979 = vor.u32 1.1754944e-38, %v1978
      %v1980 = vsel %vm1977, %v1979, %v1975
      %v1981 = vmul.f32 1.0, %v1980
      %v1982 = vrcp.pop %v1852
      %v1983 = vmul.f32 %v1852, %v1982
      %v1984 = vsub.f32 1.0, %v1983
      %v1985 = vmul.f32 %v1982, %v1984
      %v1986 = vadd.f32 %v1982, %v1985
      %vm1987 = vweird.f32 %v1852
      %vm1988 = vweird.f32 %v1982
      %vm1989 = vmor %vm1987, %vm1988
      %v1990 = vsel %vm1989, %v1982, %v1986
      %v1991 = vand.u32 2147483647, %v1852
      %vm1992 = vcmp.eq.f32.partialorder %v1991, 8.507059e+37
      %v1993 = vand.u32 %v1852, 2147483648
      %v1994 = vor.u32 1.1754944e-38, %v1993
      %v1995 = vsel %vm1992, %v1994, %v1990
      %v1996 = vmul.f32 1.0, %v1995
      %v1997 = vrcp.pop %v1853
      %v1998 = vmul.f32 %v1853, %v1997
      %v1999 = vsub.f32 1.0, %v1998
      %v2000 = vmul.f32 %v1997, %v1999
      %v2001 = vadd.f32 %v1997, %v2000
      %vm2002 = vweird.f32 %v1853
      %vm2003 = vweird.f32 %v1997
      %vm2004 = vmor %vm2002, %vm2003
      %v2005 = vsel %vm2004, %v1997, %v2001
      %v2006 = vand.u32 2147483647, %v1853
      %vm2007 = vcmp.eq.f32.partialorder %v2006, 8.507059e+37
      %v2008 = vand.u32 %v1853, 2147483648
      %v2009 = vor.u32 1.1754944e-38, %v2008
      %v2010 = vsel %vm2007, %v2009, %v2005
      %v2011 = vmul.f32 1.0, %v2010
      %v2012 = vrcp.pop %v1854
      %v2013 = vmul.f32 %v1854, %v2012
      %v2014 = vsub.f32 1.0, %v2013
      %v2015 = vmul.f32 %v2012, %v2014
      %v2016 = vadd.f32 %v2012, %v2015
      %vm2017 = vweird.f32 %v1854
      %vm2018 = vweird.f32 %v2012
      %vm2019 = vmor %vm2017, %vm2018
      %v2020 = vsel %vm2019, %v2012, %v2016
      %v2021 = vand.u32 2147483647, %v1854
      %vm2022 = vcmp.eq.f32.partialorder %v2021, 8.507059e+37
      %v2023 = vand.u32 %v1854, 2147483648
      %v2024 = vor.u32 1.1754944e-38, %v2023
      %v2025 = vsel %vm2022, %v2024, %v2020
      %v2026 = vmul.f32 1.0, %v2025
      %v2027 = vrcp.pop %v1855
      %v2028 = vmul.f32 %v1855, %v2027
      %v2029 = vsub.f32 1.0, %v2028
      %v2030 = vmul.f32 %v2027, %v2029
      %v2031 = vadd.f32 %v2027, %v2030
      %vm2032 = vweird.f32 %v1855
      %vm2033 = vweird.f32 %v2027
      %vm2034 = vmor %vm2032, %vm2033
      %v2035 = vsel %vm2034, %v2027, %v2031
      %v2036 = vand.u32 2147483647, %v1855
      %vm2037 = vcmp.eq.f32.partialorder %v2036, 8.507059e+37
      %v2038 = vand.u32 %v1855, 2147483648
      %v2039 = vor.u32 1.1754944e-38, %v2038
      %v2040 = vsel %vm2037, %v2039, %v2035
      %v2041 = vmul.f32 1.0, %v2040
      %v2042 = vrcp.pop %v1856
      %v2043 = vmul.f32 %v1856, %v2042
      %v2044 = vsub.f32 1.0, %v2043
      %v2045 = vmul.f32 %v2042, %v2044
      %v2046 = vadd.f32 %v2042, %v2045
      %vm2047 = vweird.f32 %v1856
      %vm2048 = vweird.f32 %v2042
      %vm2049 = vmor %vm2047, %vm2048
      %v2050 = vsel %vm2049, %v2042, %v2046
      %v2051 = vand.u32 2147483647, %v1856
      %vm2052 = vcmp.eq.f32.partialorder %v2051, 8.507059e+37
      %v2053 = vand.u32 %v1856, 2147483648
      %v2054 = vor.u32 1.1754944e-38, %v2053
      %v2055 = vsel %vm2052, %v2054, %v2050
      %v2056 = vmul.f32 1.0, %v2055
      %v2057 = vrcp.pop %v1857
      %v2058 = vmul.f32 %v1857, %v2057
      %v2059 = vsub.f32 1.0, %v2058
      %v2060 = vmul.f32 %v2057, %v2059
      %v2061 = vadd.f32 %v2057, %v2060
      %vm2062 = vweird.f32 %v1857
      %vm2063 = vweird.f32 %v2057
      %vm2064 = vmor %vm2062, %vm2063
      %v2065 = vsel %vm2064, %v2057, %v2061
      %v2066 = vand.u32 2147483647, %v1857
      %vm2067 = vcmp.eq.f32.partialorder %v2066, 8.507059e+37
      %v2068 = vand.u32 %v1857, 2147483648
      %v2069 = vor.u32 1.1754944e-38, %v2068
      %v2070 = vsel %vm2067, %v2069, %v2065
      %v2071 = vmul.f32 1.0, %v2070
      %v2072 = vrcp.pop %v1858
      %v2073 = vmul.f32 %v1858, %v2072
      %v2074 = vsub.f32 1.0, %v2073
      %v2075 = vmul.f32 %v2072, %v2074
      %v2076 = vadd.f32 %v2072, %v2075
      %vm2077 = vweird.f32 %v1858
      %vm2078 = vweird.f32 %v2072
      %vm2079 = vmor %vm2077, %vm2078
      %v2080 = vsel %vm2079, %v2072, %v2076
      %v2081 = vand.u32 2147483647, %v1858
      %vm2082 = vcmp.eq.f32.partialorder %v2081, 8.507059e+37
      %v2083 = vand.u32 %v1858, 2147483648
      %v2084 = vor.u32 1.1754944e-38, %v2083
      %v2085 = vsel %vm2082, %v2084, %v2080
      %v2086 = vmul.f32 1.0, %v2085
      %v2087 = vrcp.pop %v1859
      %v2088 = vmul.f32 %v1859, %v2087
      %v2089 = vsub.f32 1.0, %v2088
      %v2090 = vmul.f32 %v2087, %v2089
      %v2091 = vadd.f32 %v2087, %v2090
      %vm2092 = vweird.f32 %v1859
      %vm2093 = vweird.f32 %v2087
      %vm2094 = vmor %vm2092, %vm2093
      %v2095 = vsel %vm2094, %v2087, %v2091
      %v2096 = vand.u32 2147483647, %v1859
      %vm2097 = vcmp.eq.f32.partialorder %v2096, 8.507059e+37
      %v2098 = vand.u32 %v1859, 2147483648
      %v2099 = vor.u32 1.1754944e-38, %v2098
      %v2100 = vsel %vm2097, %v2099, %v2095
      %v2101 = vmul.f32 1.0, %v2100
      %v2102 = vrcp.pop %v1860
      %v2103 = vmul.f32 %v1860, %v2102
      %v2104 = vsub.f32 1.0, %v2103
      %v2105 = vmul.f32 %v2102, %v2104
      %v2106 = vadd.f32 %v2102, %v2105
      %vm2107 = vweird.f32 %v1860
      %vm2108 = vweird.f32 %v2102
      %vm2109 = vmor %vm2107, %vm2108
      %v2110 = vsel %vm2109, %v2102, %v2106
      %v2111 = vand.u32 2147483647, %v1860
      %vm2112 = vcmp.eq.f32.partialorder %v2111, 8.507059e+37
      %v2113 = vand.u32 %v1860, 2147483648
      %v2114 = vor.u32 1.1754944e-38, %v2113
      %v2115 = vsel %vm2112, %v2114, %v2110
      %v2116 = vmul.f32 1.0, %v2115
      %v2117 = vrcp.pop %v1861
      %v2118 = vmul.f32 %v1861, %v2117
      %v2119 = vsub.f32 1.0, %v2118
      %v2120 = vmul.f32 %v2117, %v2119
      %v2121 = vadd.f32 %v2117, %v2120
      %vm2122 = vweird.f32 %v1861
      %vm2123 = vweird.f32 %v2117
      %vm2124 = vmor %vm2122, %vm2123
      %v2125 = vsel %vm2124, %v2117, %v2121
      %v2126 = vand.u32 2147483647, %v1861
      %vm2127 = vcmp.eq.f32.partialorder %v2126, 8.507059e+37
      %v2128 = vand.u32 %v1861, 2147483648
      %v2129 = vor.u32 1.1754944e-38, %v2128
      %v2130 = vsel %vm2127, %v2129, %v2125
      %v2131 = vmul.f32 1.0, %v2130
      %v2132 = vrcp.pop %v1862
      %v2133 = vmul.f32 %v1862, %v2132
      %v2134 = vsub.f32 1.0, %v2133
      %v2135 = vmul.f32 %v2132, %v2134
      %v2136 = vadd.f32 %v2132, %v2135
      %vm2137 = vweird.f32 %v1862
      %vm2138 = vweird.f32 %v2132
      %vm2139 = vmor %vm2137, %vm2138
      %v2140 = vsel %vm2139, %v2132, %v2136
      %v2141 = vand.u32 2147483647, %v1862
      %vm2142 = vcmp.eq.f32.partialorder %v2141, 8.507059e+37
      %v2143 = vand.u32 %v1862, 2147483648
      %v2144 = vor.u32 1.1754944e-38, %v2143
      %v2145 = vsel %vm2142, %v2144, %v2140
      %v2146 = vmul.f32 1.0, %v2145
      %v2147 = vrcp.pop %v1863
      %v2148 = vmul.f32 %v1863, %v2147
      %v2149 = vsub.f32 1.0, %v2148
      %v2150 = vmul.f32 %v2147, %v2149
      %v2151 = vadd.f32 %v2147, %v2150
      %vm2152 = vweird.f32 %v1863
      %vm2153 = vweird.f32 %v2147
      %vm2154 = vmor %vm2152, %vm2153
      %v2155 = vsel %vm2154, %v2147, %v2151
      %v2156 = vand.u32 2147483647, %v1863
      %vm2157 = vcmp.eq.f32.partialorder %v2156, 8.507059e+37
      %v2158 = vand.u32 %v1863, 2147483648
      %v2159 = vor.u32 1.1754944e-38, %v2158
      %v2160 = vsel %vm2157, %v2159, %v2155
      %v2161 = vmul.f32 1.0, %v2160
      %v2162 = vrcp.pop %v1864
      %v2163 = vmul.f32 %v1864, %v2162
      %v2164 = vsub.f32 1.0, %v2163
      %v2165 = vmul.f32 %v2162, %v2164
      %v2166 = vadd.f32 %v2162, %v2165
      %vm2167 = vweird.f32 %v1864
      %vm2168 = vweird.f32 %v2162
      %vm2169 = vmor %vm2167, %vm2168
      %v2170 = vsel %vm2169, %v2162, %v2166
      %v2171 = vand.u32 2147483647, %v1864
      %vm2172 = vcmp.eq.f32.partialorder %v2171, 8.507059e+37
      %v2173 = vand.u32 %v1864, 2147483648
      %v2174 = vor.u32 1.1754944e-38, %v2173
      %v2175 = vsel %vm2172, %v2174, %v2170
      %v2176 = vmul.f32 1.0, %v2175
      %v2177 = vrcp.pop %v1865
      %v2178 = vmul.f32 %v1865, %v2177
      %v2179 = vsub.f32 1.0, %v2178
      %v2180 = vmul.f32 %v2177, %v2179
      %v2181 = vadd.f32 %v2177, %v2180
      %vm2182 = vweird.f32 %v1865
      %vm2183 = vweird.f32 %v2177
      %vm2184 = vmor %vm2182, %vm2183
      %v2185 = vsel %vm2184, %v2177, %v2181
      %v2186 = vand.u32 2147483647, %v1865
      %vm2187 = vcmp.eq.f32.partialorder %v2186, 8.507059e+37
      %v2188 = vand.u32 %v1865, 2147483648
      %v2189 = vor.u32 1.1754944e-38, %v2188
      %v2190 = vsel %vm2187, %v2189, %v2185
      %v2191 = vmul.f32 1.0, %v2190
      %v2192 = vrcp.pop %v1866
      %v2193 = vmul.f32 %v1866, %v2192
      %v2194 = vsub.f32 1.0, %v2193
      %v2195 = vmul.f32 %v2192, %v2194
      %v2196 = vadd.f32 %v2192, %v2195
      %vm2197 = vweird.f32 %v1866
      %vm2198 = vweird.f32 %v2192
      %vm2199 = vmor %vm2197, %vm2198
      %v2200 = vsel %vm2199, %v2192, %v2196
      %v2201 = vand.u32 2147483647, %v1866
      %vm2202 = vcmp.eq.f32.partialorder %v2201, 8.507059e+37
      %v2203 = vand.u32 %v1866, 2147483648
      %v2204 = vor.u32 1.1754944e-38, %v2203
      %v2205 = vsel %vm2202, %v2204, %v2200
      %v2206 = vmul.f32 1.0, %v2205
      %v2207 = vrcp.pop %v1867
      %v2208 = vmul.f32 %v1867, %v2207
      %v2209 = vsub.f32 1.0, %v2208
      %v2210 = vmul.f32 %v2207, %v2209
      %v2211 = vadd.f32 %v2207, %v2210
      %vm2212 = vweird.f32 %v1867
      %vm2213 = vweird.f32 %v2207
      %vm2214 = vmor %vm2212, %vm2213
      %v2215 = vsel %vm2214, %v2207, %v2211
      %v2216 = vand.u32 2147483647, %v1867
      %vm2217 = vcmp.eq.f32.partialorder %v2216, 8.507059e+37
      %v2218 = vand.u32 %v1867, 2147483648
      %v2219 = vor.u32 1.1754944e-38, %v2218
      %v2220 = vsel %vm2217, %v2219, %v2215
      %v2221 = vmul.f32 1.0, %v2220
      %v2222 = vrcp.pop %v1868
      %v2223 = vmul.f32 %v1868, %v2222
      %v2224 = vsub.f32 1.0, %v2223
      %v2225 = vmul.f32 %v2222, %v2224
      %v2226 = vadd.f32 %v2222, %v2225
      %vm2227 = vweird.f32 %v1868
      %vm2228 = vweird.f32 %v2222
      %vm2229 = vmor %vm2227, %vm2228
      %v2230 = vsel %vm2229, %v2222, %v2226
      %v2231 = vand.u32 2147483647, %v1868
      %vm2232 = vcmp.eq.f32.partialorder %v2231, 8.507059e+37
      %v2233 = vand.u32 %v1868, 2147483648
      %v2234 = vor.u32 1.1754944e-38, %v2233
      %v2235 = vsel %vm2232, %v2234, %v2230
      %v2236 = vmul.f32 1.0, %v2235
      %v2237 = vrcp.pop %v1869
      %v2238 = vmul.f32 %v1869, %v2237
      %v2239 = vsub.f32 1.0, %v2238
      %v2240 = vmul.f32 %v2237, %v2239
      %v2241 = vadd.f32 %v2237, %v2240
      %vm2242 = vweird.f32 %v1869
      %vm2243 = vweird.f32 %v2237
      %vm2244 = vmor %vm2242, %vm2243
      %v2245 = vsel %vm2244, %v2237, %v2241
      %v2246 = vand.u32 2147483647, %v1869
      %vm2247 = vcmp.eq.f32.partialorder %v2246, 8.507059e+37
      %v2248 = vand.u32 %v1869, 2147483648
      %v2249 = vor.u32 1.1754944e-38, %v2248
      %v2250 = vsel %vm2247, %v2249, %v2245
      %v2251 = vmul.f32 1.0, %v2250
      %v2252 = vrcp.pop %v1870
      %v2253 = vmul.f32 %v1870, %v2252
      %v2254 = vsub.f32 1.0, %v2253
      %v2255 = vmul.f32 %v2252, %v2254
      %v2256 = vadd.f32 %v2252, %v2255
      %vm2257 = vweird.f32 %v1870
      %vm2258 = vweird.f32 %v2252
      %vm2259 = vmor %vm2257, %vm2258
      %v2260 = vsel %vm2259, %v2252, %v2256
      %v2261 = vand.u32 2147483647, %v1870
      %vm2262 = vcmp.eq.f32.partialorder %v2261, 8.507059e+37
      %v2263 = vand.u32 %v1870, 2147483648
      %v2264 = vor.u32 1.1754944e-38, %v2263
      %v2265 = vsel %vm2262, %v2264, %v2260
      %v2266 = vmul.f32 1.0, %v2265
      %v2267 = vrcp.pop %v1871
      %v2268 = vmul.f32 %v1871, %v2267
      %v2269 = vsub.f32 1.0, %v2268
      %v2270 = vmul.f32 %v2267, %v2269
      %v2271 = vadd.f32 %v2267, %v2270
      %vm2272 = vweird.f32 %v1871
      %vm2273 = vweird.f32 %v2267
      %vm2274 = vmor %vm2272, %vm2273
      %v2275 = vsel %vm2274, %v2267, %v2271
      %v2276 = vand.u32 2147483647, %v1871
      %vm2277 = vcmp.eq.f32.partialorder %v2276, 8.507059e+37
      %v2278 = vand.u32 %v1871, 2147483648
      %v2279 = vor.u32 1.1754944e-38, %v2278
      %v2280 = vsel %vm2277, %v2279, %v2275
      %v2281 = vmul.f32 1.0, %v2280
      %v2282 = vrcp.pop %v1872
      %v2283 = vmul.f32 %v1872, %v2282
      %v2284 = vsub.f32 1.0, %v2283
      %v2285 = vmul.f32 %v2282, %v2284
      %v2286 = vadd.f32 %v2282, %v2285
      %vm2287 = vweird.f32 %v1872
      %vm2288 = vweird.f32 %v2282
      %vm2289 = vmor %vm2287, %vm2288
      %v2290 = vsel %vm2289, %v2282, %v2286
      %v2291 = vand.u32 2147483647, %v1872
      %vm2292 = vcmp.eq.f32.partialorder %v2291, 8.507059e+37
      %v2293 = vand.u32 %v1872, 2147483648
      %v2294 = vor.u32 1.1754944e-38, %v2293
      %v2295 = vsel %vm2292, %v2294, %v2290
      %v2296 = vmul.f32 1.0, %v2295
      %v2297 = vrcp.pop %v1873
      %v2298 = vmul.f32 %v1873, %v2297
      %v2299 = vsub.f32 1.0, %v2298
      %v2300 = vmul.f32 %v2297, %v2299
      %v2301 = vadd.f32 %v2297, %v2300
      %vm2302 = vweird.f32 %v1873
      %vm2303 = vweird.f32 %v2297
      %vm2304 = vmor %vm2302, %vm2303
      %v2305 = vsel %vm2304, %v2297, %v2301
      %v2306 = vand.u32 2147483647, %v1873
      %vm2307 = vcmp.eq.f32.partialorder %v2306, 8.507059e+37
      %v2308 = vand.u32 %v1873, 2147483648
      %v2309 = vor.u32 1.1754944e-38, %v2308
      %v2310 = vsel %vm2307, %v2309, %v2305
      %v2311 = vmul.f32 1.0, %v2310
      %v2312 = vrcp.pop %v1874
      %v2313 = vmul.f32 %v1874, %v2312
      %v2314 = vsub.f32 1.0, %v2313
      %v2315 = vmul.f32 %v2312, %v2314
      %v2316 = vadd.f32 %v2312, %v2315
      %vm2317 = vweird.f32 %v1874
      %vm2318 = vweird.f32 %v2312
      %vm2319 = vmor %vm2317, %vm2318
      %v2320 = vsel %vm2319, %v2312, %v2316
      %v2321 = vand.u32 2147483647, %v1874
      %vm2322 = vcmp.eq.f32.partialorder %v2321, 8.507059e+37
      %v2323 = vand.u32 %v1874, 2147483648
      %v2324 = vor.u32 1.1754944e-38, %v2323
      %v2325 = vsel %vm2322, %v2324, %v2320
      %v2326 = vmul.f32 1.0, %v2325
      %v2327 = vrcp.pop %v1875
      %v2328 = vmul.f32 %v1875, %v2327
      %v2329 = vsub.f32 1.0, %v2328
      %v2330 = vmul.f32 %v2327, %v2329
      %v2331 = vadd.f32 %v2327, %v2330
      %vm2332 = vweird.f32 %v1875
      %vm2333 = vweird.f32 %v2327
      %vm2334 = vmor %vm2332, %vm2333
      %v2335 = vsel %vm2334, %v2327, %v2331
      %v2336 = vand.u32 2147483647, %v1875
      %vm2337 = vcmp.eq.f32.partialorder %v2336, 8.507059e+37
      %v2338 = vand.u32 %v1875, 2147483648
      %v2339 = vor.u32 1.1754944e-38, %v2338
      %v2340 = vsel %vm2337, %v2339, %v2335
      %v2341 = vmul.f32 1.0, %v2340
      %v2342 = vrcp.pop %v1876
      %v2343 = vmul.f32 %v1876, %v2342
      %v2344 = vsub.f32 1.0, %v2343
      %v2345 = vmul.f32 %v2342, %v2344
      %v2346 = vadd.f32 %v2342, %v2345
      %vm2347 = vweird.f32 %v1876
      %vm2348 = vweird.f32 %v2342
      %vm2349 = vmor %vm2347, %vm2348
      %v2350 = vsel %vm2349, %v2342, %v2346
      %v2351 = vand.u32 2147483647, %v1876
      %vm2352 = vcmp.eq.f32.partialorder %v2351, 8.507059e+37
      %v2353 = vand.u32 %v1876, 2147483648
      %v2354 = vor.u32 1.1754944e-38, %v2353
      %v2355 = vsel %vm2352, %v2354, %v2350
      %v2356 = vmul.f32 1.0, %v2355
      %2357 = vst [vmem:[%s439] sm:$0xff] %v1339
      %2358 = vst [vmem:[%s439 + $0x8] sm:$0xff] %v1891
      %2359 = vst [vmem:[%s439 + $0x10] sm:$0xff] %v1011
      %2360 = vst [vmem:[%s439 + $0x18] sm:$0xff] %v1100
      %2361 = vst [vmem:[%s439 + $0x20] sm:$0xff] %v1340
      %2362 = vst [vmem:[%s439 + $0x28] sm:$0xff] %v1906
      %2363 = vst [vmem:[%s439 + $0x30] sm:$0xff] %v1013
      %2364 = vst [vmem:[%s439 + $0x38] sm:$0xff] %v1102
      %2365 = vst [vmem:[%s439 + $0x40] sm:$0xff] %v1341
      %2366 = vst [vmem:[%s439 + $0x48] sm:$0xff] %v1921
      %2367 = vst [vmem:[%s439 + $0x50] sm:$0xff] %v1016
      %2368 = vst [vmem:[%s439 + $0x58] sm:$0xff] %v1105
      %2369 = vst [vmem:[%s439 + $0x60] sm:$0xff] %v1342
      %2370 = vst [vmem:[%s439 + $0x68] sm:$0xff] %v1936
      %2371 = vst [vmem:[%s439 + $0x70] sm:$0xff] %v1018
      %2372 = vst [vmem:[%s439 + $0x78] sm:$0xff] %v1107
      %2373 = vst [vmem:[%s439 + $0x80] sm:$0xff] %v1343
      %2374 = vst [vmem:[%s439 + $0x88] sm:$0xff] %v1951
      %2375 = vst [vmem:[%s439 + $0x90] sm:$0xff] %v1021
      %2376 = vst [vmem:[%s439 + $0x98] sm:$0xff] %v1110
      %2377 = vst [vmem:[%s439 + $0xa0] sm:$0xff] %v1344
      %2378 = vst [vmem:[%s439 + $0xa8] sm:$0xff] %v1966
      %2379 = vst [vmem:[%s439 + $0xb0] sm:$0xff] %v1023
      %2380 = vst [vmem:[%s439 + $0xb8] sm:$0xff] %v1112
      %2381 = vst [vmem:[%s439 + $0xc0] sm:$0xff] %v1345
      %2382 = vst [vmem:[%s439 + $0xc8] sm:$0xff] %v1981
      %2383 = vst [vmem:[%s439 + $0xd0] sm:$0xff] %v1026
      %2384 = vst [vmem:[%s439 + $0xd8] sm:$0xff] %v1115
      %2385 = vst [vmem:[%s439 + $0xe0] sm:$0xff] %v1346
      %2386 = vst [vmem:[%s439 + $0xe8] sm:$0xff] %v1996
      %2387 = vst [vmem:[%s439 + $0xf0] sm:$0xff] %v1028
      %2388 = vst [vmem:[%s439 + $0xf8] sm:$0xff] %v1117
      %2389 = vst [vmem:[%s439 + $0x100] sm:$0xff] %v1347
      %2390 = vst [vmem:[%s439 + $0x108] sm:$0xff] %v2011
      %2391 = vst [vmem:[%s439 + $0x110] sm:$0xff] %v1031
      %2392 = vst [vmem:[%s439 + $0x118] sm:$0xff] %v1120
      %2393 = vst [vmem:[%s439 + $0x120] sm:$0xff] %v1348
      %2394 = vst [vmem:[%s439 + $0x128] sm:$0xff] %v2026
      %2395 = vst [vmem:[%s439 + $0x130] sm:$0xff] %v1033
      %2396 = vst [vmem:[%s439 + $0x138] sm:$0xff] %v1122
      %2397 = vst [vmem:[%s439 + $0x140] sm:$0xff] %v1349
      %2398 = vst [vmem:[%s439 + $0x148] sm:$0xff] %v2041
      %2399 = vst [vmem:[%s439 + $0x150] sm:$0xff] %v1036
      %2400 = vst [vmem:[%s439 + $0x158] sm:$0xff] %v1125
      %2401 = vst [vmem:[%s439 + $0x160] sm:$0xff] %v1350
      %2402 = vst [vmem:[%s439 + $0x168] sm:$0xff] %v2056
      %2403 = vst [vmem:[%s439 + $0x170] sm:$0xff] %v1038
      %2404 = vst [vmem:[%s439 + $0x178] sm:$0xff] %v1127
      %2405 = vst [vmem:[%s439 + $0x180] sm:$0xff] %v1351
      %2406 = vst [vmem:[%s439 + $0x188] sm:$0xff] %v2071
      %2407 = vst [vmem:[%s439 + $0x190] sm:$0xff] %v1041
      %2408 = vst [vmem:[%s439 + $0x198] sm:$0xff] %v1130
      %2409 = vst [vmem:[%s439 + $0x1a0] sm:$0xff] %v1352
      %2410 = vst [vmem:[%s439 + $0x1a8] sm:$0xff] %v2086
      %2411 = vst [vmem:[%s439 + $0x1b0] sm:$0xff] %v1043
      %2412 = vst [vmem:[%s439 + $0x1b8] sm:$0xff] %v1132
      %2413 = vst [vmem:[%s439 + $0x1c0] sm:$0xff] %v1353
      %2414 = vst [vmem:[%s439 + $0x1c8] sm:$0xff] %v2101
      %2415 = vst [vmem:[%s439 + $0x1d0] sm:$0xff] %v1046
      %2416 = vst [vmem:[%s439 + $0x1d8] sm:$0xff] %v1135
      %2417 = vst [vmem:[%s439 + $0x1e0] sm:$0xff] %v1354
      %2418 = vst [vmem:[%s439 + $0x1e8] sm:$0xff] %v2116
      %2419 = vst [vmem:[%s439 + $0x1f0] sm:$0xff] %v1048
      %2420 = vst [vmem:[%s439 + $0x1f8] sm:$0xff] %v1137
      %2421 = vst [vmem:[%s439 + $0x200] sm:$0xff] %v1355
      %2422 = vst [vmem:[%s439 + $0x208] sm:$0xff] %v2131
      %2423 = vst [vmem:[%s439 + $0x210] sm:$0xff] %v1051
      %2424 = vst [vmem:[%s439 + $0x218] sm:$0xff] %v1140
      %2425 = vst [vmem:[%s439 + $0x220] sm:$0xff] %v1356
      %2426 = vst [vmem:[%s439 + $0x228] sm:$0xff] %v2146
      %2427 = vst [vmem:[%s439 + $0x230] sm:$0xff] %v1053
      %2428 = vst [vmem:[%s439 + $0x238] sm:$0xff] %v1142
      %2429 = vst [vmem:[%s439 + $0x240] sm:$0xff] %v1357
      %2430 = vst [vmem:[%s439 + $0x248] sm:$0xff] %v2161
      %2431 = vst [vmem:[%s439 + $0x250] sm:$0xff] %v1056
      %2432 = vst [vmem:[%s439 + $0x258] sm:$0xff] %v1145
      %2433 = vst [vmem:[%s439 + $0x260] sm:$0xff] %v1358
      %2434 = vst [vmem:[%s439 + $0x268] sm:$0xff] %v2176
      %2435 = vst [vmem:[%s439 + $0x270] sm:$0xff] %v1058
      %2436 = vst [vmem:[%s439 + $0x278] sm:$0xff] %v1147
      %2437 = vst [vmem:[%s439 + $0x280] sm:$0xff] %v1359
      %2438 = vst [vmem:[%s439 + $0x288] sm:$0xff] %v2191
      %2439 = vst [vmem:[%s439 + $0x290] sm:$0xff] %v1061
      %2440 = vst [vmem:[%s439 + $0x298] sm:$0xff] %v1150
      %2441 = vst [vmem:[%s439 + $0x2a0] sm:$0xff] %v1360
      %2442 = vst [vmem:[%s439 + $0x2a8] sm:$0xff] %v2206
      %2443 = vst [vmem:[%s439 + $0x2b0] sm:$0xff] %v1063
      %2444 = vst [vmem:[%s439 + $0x2b8] sm:$0xff] %v1152
      %2445 = vst [vmem:[%s439 + $0x2c0] sm:$0xff] %v1361
      %2446 = vst [vmem:[%s439 + $0x2c8] sm:$0xff] %v2221
      %2447 = vst [vmem:[%s439 + $0x2d0] sm:$0xff] %v1066
      %2448 = vst [vmem:[%s439 + $0x2d8] sm:$0xff] %v1155
      %2449 = vst [vmem:[%s439 + $0x2e0] sm:$0xff] %v1362
      %2450 = vst [vmem:[%s439 + $0x2e8] sm:$0xff] %v2236
      %2451 = vst [vmem:[%s439 + $0x2f0] sm:$0xff] %v1068
      %2452 = vst [vmem:[%s439 + $0x2f8] sm:$0xff] %v1157
      %2453 = vst [vmem:[%s439 + $0x300] sm:$0xff] %v1363
      %2454 = vst [vmem:[%s439 + $0x308] sm:$0xff] %v2251
      %2455 = vst [vmem:[%s439 + $0x310] sm:$0xff] %v1071
      %2456 = vst [vmem:[%s439 + $0x318] sm:$0xff] %v1160
      %2457 = vst [vmem:[%s439 + $0x320] sm:$0xff] %v1364
      %2458 = vst [vmem:[%s439 + $0x328] sm:$0xff] %v2266
      %2459 = vst [vmem:[%s439 + $0x330] sm:$0xff] %v1073
      %2460 = vst [vmem:[%s439 + $0x338] sm:$0xff] %v1162
      %2461 = vst [vmem:[%s439 + $0x340] sm:$0xff] %v1365
      %2462 = vst [vmem:[%s439 + $0x348] sm:$0xff] %v2281
      %2463 = vst [vmem:[%s439 + $0x350] sm:$0xff] %v1076
      %2464 = vst [vmem:[%s439 + $0x358] sm:$0xff] %v1165
      %2465 = vst [vmem:[%s439 + $0x360] sm:$0xff] %v1366
      %2466 = vst [vmem:[%s439 + $0x368] sm:$0xff] %v2296
      %2467 = vst [vmem:[%s439 + $0x370] sm:$0xff] %v1078
      %2468 = vst [vmem:[%s439 + $0x378] sm:$0xff] %v1167
      %2469 = vst [vmem:[%s439 + $0x380] sm:$0xff] %v1367
      %2470 = vst [vmem:[%s439 + $0x388] sm:$0xff] %v2311
      %2471 = vst [vmem:[%s439 + $0x390] sm:$0xff] %v1081
      %2472 = vst [vmem:[%s439 + $0x398] sm:$0xff] %v1170
      %2473 = vst [vmem:[%s439 + $0x3a0] sm:$0xff] %v1368
      %2474 = vst [vmem:[%s439 + $0x3a8] sm:$0xff] %v2326
      %2475 = vst [vmem:[%s439 + $0x3b0] sm:$0xff] %v1083
      %2476 = vst [vmem:[%s439 + $0x3b8] sm:$0xff] %v1172
      %2477 = vst [vmem:[%s439 + $0x3c0] sm:$0xff] %v1369
      %2478 = vst [vmem:[%s439 + $0x3c8] sm:$0xff] %v2341
      %2479 = vst [vmem:[%s439 + $0x3d0] sm:$0xff] %v1086
      %2480 = vst [vmem:[%s439 + $0x3d8] sm:$0xff] %v1175
      %2481 = vst [vmem:[%s439 + $0x3e0] sm:$0xff] %v1370
      %2482 = vst [vmem:[%s439 + $0x3e8] sm:$0xff] %v2356
      %2483 = vst [vmem:[%s439 + $0x3f0] sm:$0xff] %v1088
      %2484 = vst [vmem:[%s439 + $0x3f8] sm:$0xff] %v1177
      %s2485 = smul.u32 32, %s23
      %p2486 = scmp.lt.s32.totalorder %s2485, 63
      %s2487 = scalar_select %p2486, %s2485, 63
      %s2488 = smul.addr %s2487, 4
      %s2489 = smul.addr %s2488, 8
      %s2490 = scalar_lea.vmem %s12, %s2489
      // Predicated region
      $region69: #{vae_forward.1} parent=67 // pred_check
        %p2491 = pneg %p303
      $region70: #{vae_forward.1} parent=67 // pred_check_branch
        %2493 = sbr.rel (%p2491) target = $region72
      $region71: #{vae_forward.1} parent=67 // pred_region
        %s2494 = smul.u32 32, %s23
      $region72: #{vae_forward.1} parent=67 // pred_fallthru
        _
    $region68: #{vae_forward.1} parent=5 // pred_fallthru
      _
    %p2495 = scmp.le.s32.totalorder 2, %s18
    // Predicated region
    $region73: #{vae_forward.1} parent=5 // pred_check
      %p2496 = pneg %p2495
    $region74: #{vae_forward.1} parent=5 // pred_check_branch
      %2498 = sbr.rel (%p2496) target = $region76
    $region75: #{vae_forward.1} parent=5 // pred_region
      %s2499 = ssub.s32 %s18, 2
      // Predicated region
      $region77: #{vae_forward.1} parent=75 // pred_check
        %p2500 = pneg %p309
      $region78: #{vae_forward.1} parent=75 // pred_check_branch
        %2502 = sbr.rel (%p2500) target = $region80
      $region79: #{vae_forward.1} parent=75 // pred_region
        %s2503 = smul.u32 32, %s24
        %p2504 = scmp.lt.s32.totalorder %s2503, 63
        %s2505 = scalar_select %p2504, %s2503, 63
        %s2506 = smul.addr %s2505, 4
        %s2507 = smul.addr %s2506, 8
        %s2508 = scalar_lea.vmem %s12, %s2507
      $region80: #{vae_forward.1} parent=75 // pred_fallthru
        _
    $region76: #{vae_forward.1} parent=5 // pred_fallthru
      _
  $region6: #{vae_forward.1} parent=0 // loop_footer
    %s22 = sadd.s32 1, %s18
  $region7: #{vae_forward.1} parent=0 // loop_footer_branch
    %17 = sbr.rel target = $region3
  $region8: #{vae_forward.1} parent=0 // loop_exit
    _

</llo_original>
